<compile_context>
chip_gen: v5e
topology: v5e:2x2
jax: 0.10.0
libtpu: 0.0.40
codegen_flags: <defaults>
</compile_context>

<pallas_src>
import numpy as np
import jax
import jax.numpy as jnp
from jax.experimental import pallas as pl
from jax.experimental.pallas import tpu as pltpu

PERIODS = (0.25, 0.5, 1.0, 2.0)
AMP_SMOOTH = 0.15   # _apply_emd_constrained_smoothing smoothing_factor
PHS_SMOOTH = 0.10   # _apply_spatial_smoothing smoothing_factor
N_XPACK = 12        # [amps(4) | cos(ph)(4) | sin(ph)(4)]    (smoothing RHS)
N_PPACK = 22        # [amps(4)|cos(4)|sin(4)|bmin(4)|bmax(4)|offset|trend]
N_BASIS = 16        # [1, t, sin(w_i t)x4, cos(w_i t)x4] = 10 rows, padded to 16
VMEM_LIMIT = 32 * 1024 * 1024   # explicit scoped-VMEM budget (fits v5e..v7x)


def _round_up(x, m):
    return ((x + m - 1) // m) * m


def _largest_divisor(n, candidates):
    for c in candidates:
        if c <= n and n % c == 0:
            return c
    return n


# ----------------------------------------------------------------------------
# Host-side glue: neighbor graph + EMD-derived amplitude bounds (numpy).
# ----------------------------------------------------------------------------
def build_neighbor_graph(coordinates: np.ndarray, n_neighbors: int):
    """kNN graph (brute-force, equivalent to sklearn kd_tree for these sizes)."""
    d2 = np.sum((coordinates[:, None, :] - coordinates[None, :, :]) ** 2, axis=-1)
    dist = np.sqrt(d2)
    order = np.argsort(dist, axis=1)                     # self is index 0
    neighbor_indices = order[:, 1:n_neighbors + 1]
    neighbor_distances = np.take_along_axis(dist, neighbor_indices, axis=1)
    weights = np.exp(-neighbor_distances / np.mean(neighbor_distances))
    weights = weights / (np.sum(weights, axis=1, keepdims=True) + 1e-06)
    return neighbor_indices, weights.astype(np.float32)


def dense_neighbor_matrix(neighbor_indices: np.ndarray, weights: np.ndarray):
    S, K = neighbor_indices.shape
    W = np.zeros((S, S), dtype=np.float32)
    rows = np.repeat(np.arange(S), K)
    W[rows, neighbor_indices.reshape(-1)] = weights.reshape(-1)
    return W


def get_emd_amplitude_bounds(emd_imfs: np.ndarray, n_stations: int, period_index: int):
    """Exact port of _get_emd_amplitude_bounds (host-side, numpy)."""
    bounds = []
    period_to_freq_band = {0: (60, 120), 1: (120, 280), 2: (280, 400), 3: (400, 1000)}
    target = period_to_freq_band.get(period_index, (60, 1000))
    default_bounds = {0: (0, 15), 1: (0, 25), 2: (0, 40), 3: (0, 30)}
    for station_idx in range(n_stations):
        if station_idx < len(emd_imfs):
            station_imfs = emd_imfs[station_idx]
            station_amplitudes = []
            for imf_idx in range(station_imfs.shape[0]):
                if np.any(station_imfs[imf_idx] != 0):
                    imf_signal = station_imfs[imf_idx]
                    zero_crossings = np.where(np.diff(np.signbit(imf_signal)))[0]
                    if len(zero_crossings) > 2:
                        avg_half_period = np.mean(np.diff(zero_crossings)) * 6
                        estimated_period = avg_half_period * 2
                        if target[0] <= estimated_period <= target[1]:
                            station_amplitudes.append(np.std(imf_signal))
            if station_amplitudes:
                mean_amp = np.mean(station_amplitudes)
                std_amp = (np.std(station_amplitudes)
                           if len(station_amplitudes) > 1 else mean_amp * 0.3)
                bounds.append((float(max(0.0, mean_amp - 2 * std_amp)),
                               float(mean_amp + 2 * std_amp)))
            else:
                bounds.append(default_bounds.get(period_index, (0, 30)))
        else:
            bounds.append(default_bounds.get(period_index, (0, 30)))
    return bounds


# ----------------------------------------------------------------------------
# Kernel 1 (runs once): blocked smoothing matmul + EMD clamp + phase mixing.
# Emits C (Sp, 16) = [offset, trend, amp_s*cos_ph (4), amp_s*sin_ph (4), 0-pad].
# ----------------------------------------------------------------------------
def coeff_kernel(w_ref, p_ref, x_ref, c_ref, acc_ref):
    k = pl.program_id(1)

    @pl.when(k == 0)
    def _():
        acc_ref[...] = jnp.zeros_like(acc_ref)

    # Neighbor-weighted sums of [amps | cos | sin], reduced over station blocks.
    acc_ref[...] += jnp.dot(w_ref[...], x_ref[...],
                            preferred_element_type=jnp.float32)

    @pl.when(k == pl.num_programs(1) - 1)
    def _():
        P = p_ref[...]
        amps, cosp, sinp = P[:, 0:4], P[:, 4:8], P[:, 8:12]
        bmin, bmax = P[:, 12:16], P[:, 16:20]
        off, trd = P[:, 20:21], P[:, 21:22]

        nbr = acc_ref[...]
        nbr_amp, nbr_re, nbr_im = nbr[:, 0:4], nbr[:, 4:8], nbr[:, 8:12]

        # EMD-constrained amplitude smoothing + clamp to per-station bounds.
        amp_s = jnp.clip((1.0 - AMP_SMOOTH) * amps + AMP_SMOOTH * nbr_amp,
                         bmin, bmax)

        # Circular (phase) smoothing: cos/sin of angle(mixed) without atan2.
        mix_re = (1.0 - PHS_SMOOTH) * cosp + PHS_SMOOTH * nbr_re
        mix_im = (1.0 - PHS_SMOOTH) * sinp + PHS_SMOOTH * nbr_im
        inv_mag = jax.lax.rsqrt(mix_re * mix_re + mix_im * mix_im + 1e-12)
        cos_ph = mix_re * inv_mag
        sin_ph = mix_im * inv_mag

        zpad = jnp.zeros((amps.shape[0], N_BASIS - 10), dtype=jnp.float32)
        c_ref[...] = jnp.concatenate(
            [off, trd, amp_s * cos_ph, amp_s * sin_ph, zpad], axis=1)


# ----------------------------------------------------------------------------
# Kernel 2: streaming synthesis C @ basis, tiled over (stations, time).
# ----------------------------------------------------------------------------
def synth_kernel(c_ref, b_ref, o_ref):
    o_ref[...] = jnp.dot(c_ref[...], b_ref[...],
                         preferred_element_type=jnp.float32).astype(o_ref.dtype)


def _pick_synth_tiles(Sp, Tp, budget_bytes=10 * 1024 * 1024):
    tS = _largest_divisor(Sp, (1024, 512, 256, 128))
    tT = _largest_divisor(Tp, (1024, 512, 256, 128))

    def vmem(ts, tt):   # double-buffered f32 blocks (out + basis + coeffs)
        return 8 * (ts * tt + N_BASIS * tt + ts * N_BASIS)

    while vmem(tS, tT) > budget_bytes and tS > 128:
        tS //= 2
    while vmem(tS, tT) > budget_bytes and tT > 128:
        tT //= 2

    # Guarantee >= 2 grid programs when possible (v7x has 2 TensorCores/chip).
    if (Sp // tS) * (Tp // tT) < 2:
        if Tp // tT == 1 and (Tp // 2) % 128 == 0:
            tT = Tp // 2
        elif Sp >= 16:
            tS = max(8, (Sp // 2) // 8 * 8)
    return tS, tT


# ----------------------------------------------------------------------------
# Wrapper
# ----------------------------------------------------------------------------
def emd_insar_forward(W, amps, phases, bmin, bmax, offset, trend, time_vec,
                      out_dtype=jnp.float32):
    S = int(W.shape[0])
    T = int(time_vec.shape[0])
    Sp = _round_up(S, 128)          # lane-dense W / full MXU rows
    Tp = _round_up(T, 128)          # lane-dense (unmasked) output stores
    f32 = jnp.float32

    # ---- pack per-station parameters; cos/sin computed ONCE here (XLA). ----
    amps = amps.astype(f32)
    cosp = jnp.cos(phases.astype(f32))
    sinp = jnp.sin(phases.astype(f32))
    xpack = jnp.concatenate([amps, cosp, sinp], axis=1)                # (S, 12)
    ppack = jnp.concatenate(
        [amps, cosp, sinp, bmin.astype(f32), bmax.astype(f32),
         offset.astype(f32)[:, None], trend.astype(f32)[:, None]],
        axis=1)                                                        # (S, 22)

    W_f = W.astype(f32)
    if Sp != S:  # pad only when needed; skip the round-trip if already aligned
        xpack = jnp.zeros((Sp, N_XPACK), f32).at[:S].set(xpack)
        ppack = jnp.zeros((Sp, N_PPACK), f32).at[:S].set(ppack)
        W_f = jnp.zeros((Sp, Sp), f32).at[:S, :S].set(W_f)

    # ---- stage 1 (runs once): smoothing + clamp -> (Sp, 16) coefficients ----
    # W is blocked over both station axes so its VMEM footprint is bounded
    # regardless of S, and it is DMA'd exactly once (never per time tile).
    # TODO(synk): for very large S the kNN graph is 8-sparse; a scalar-prefetch
    # gather-accumulate kernel would replace this dense O(S^2) W @ X reduction.
    tS = _largest_divisor(Sp, (512, 256, 128))
    tSk = _largest_divisor(Sp, (512, 256, 128))
    coeffs = pl.pallas_call(
        coeff_kernel,
        out_shape=jax.ShapeDtypeStruct((Sp, N_BASIS), f32),
        grid_spec=pltpu.PrefetchScalarGridSpec(
            num_scalar_prefetch=0,
            grid=(Sp // tS, Sp // tSk),
            in_specs=[
                pl.BlockSpec((tS, tSk), lambda i, k: (i, k)),       # W block
                pl.BlockSpec((tS, N_PPACK), lambda i, k: (i, 0)),   # own params
                pl.BlockSpec((tSk, N_XPACK), lambda i, k: (k, 0)),  # smoothing rhs
            ],
            out_specs=pl.BlockSpec((tS, N_BASIS), lambda i, k: (i, 0)),
            scratch_shapes=[pltpu.VMEM((tS, N_XPACK), f32)],
        ),
        compiler_params=pltpu.CompilerParams(
            dimension_semantics=("parallel", "arbitrary"),
            vmem_limit_bytes=VMEM_LIMIT),
    )(W_f, ppack, xpack)

    # ---- time basis (XLA, once); mask so padded time columns emit zeros. ----
    t_full = time_vec.astype(f32)
    if Tp != T:
        t_full = jnp.zeros((Tp,), f32).at[:T].set(t_full)
    rows = [jnp.ones((Tp,), f32), t_full]
    rows += [jnp.sin((2.0 * np.pi / p) * t_full) for p in PERIODS]
    rows += [jnp.cos((2.0 * np.pi / p) * t_full) for p in PERIODS]
    rows += [jnp.zeros((Tp,), f32)] * (N_BASIS - len(rows))
    basis = jnp.stack(rows, axis=0)                                    # (16, Tp)
    if Tp != T:
        basis = basis * (jnp.arange(Tp) < T).astype(f32)[None, :]

    # ---- stage 2: mem-bound streaming synthesis, tiled (stations, time). ----
    tS2, tT = _pick_synth_tiles(Sp, Tp)
    out = pl.pallas_call(
        synth_kernel,
        out_shape=jax.ShapeDtypeStruct((Sp, Tp), out_dtype),
        grid_spec=pltpu.PrefetchScalarGridSpec(
            num_scalar_prefetch=0,
            grid=(Sp // tS2, Tp // tT),
            in_specs=[
                pl.BlockSpec((tS2, N_BASIS), lambda i, j: (i, 0)),   # coeffs
                pl.BlockSpec((N_BASIS, tT), lambda i, j: (0, j)),    # time basis
            ],
            out_specs=pl.BlockSpec((tS2, tT), lambda i, j: (i, j)),
        ),
        compiler_params=pltpu.CompilerParams(
            dimension_semantics=("parallel", "parallel"),
            vmem_limit_bytes=VMEM_LIMIT),
    )(coeffs, basis)

    if Sp != S or Tp != T:
        out = out[:S, :T]
    return out


# ----------------------------------------------------------------------------
# Pure numpy float64 reference (mirrors the PyTorch forward, uses arctan2).
# ----------------------------------------------------------------------------
def reference_forward_np(W, amps, phases, bmin, bmax, offset, trend, time_vec):
    W = np.asarray(W, np.float64)
    amps = np.asarray(amps, np.float64)
    phases = np.asarray(phases, np.float64)
    bmin = np.asarray(bmin, np.float64)
    bmax = np.asarray(bmax, np.float64)
    offset = np.asarray(offset, np.float64)
    trend = np.asarray(trend, np.float64)
    t = np.asarray(time_vec, np.float64)[None, :]
    sig = offset[:, None] + trend[:, None] * t
    amp_s = np.clip((1 - AMP_SMOOTH) * amps + AMP_SMOOTH * (W @ amps), bmin, bmax)
    cosp, sinp = np.cos(phases), np.sin(phases)
    mix_re = (1 - PHS_SMOOTH) * cosp + PHS_SMOOTH * (W @ cosp)
    mix_im = (1 - PHS_SMOOTH) * sinp + PHS_SMOOTH * (W @ sinp)
    phase_s = np.arctan2(mix_im, mix_re)
    for i, period in enumerate(PERIODS):
        omega = 2.0 * np.pi / period
        sig = sig + amp_s[:, i:i + 1] * np.sin(omega * t + phase_s[:, i:i + 1])
    return sig


# ----------------------------------------------------------------------------
if __name__ == "__main__":
    S, T, K = 64, 128, 8          # stations, timepoints, neighbors
    N_IMFS, IMF_LEN = 5, 100

    key = jax.random.PRNGKey(0)
    k_coord, k_rate, k_phase, k_imf, k_time = jax.random.split(key, 5)

    # Synthetic module init data (deterministic).
    coordinates = np.asarray(jax.random.uniform(k_coord, (S, 2)) * 50.0,
                             dtype=np.float64)
    ps00_rates = jax.random.normal(k_rate, (S,), dtype=jnp.float32) * 10.0
    imfs = np.asarray(jax.random.normal(k_imf, (S, N_IMFS, IMF_LEN)),
                      dtype=np.float64)
    # Make a couple of IMFs oscillatory so some stations hit the EMD-derived
    # bound branch and others fall back to defaults.
    tt = np.arange(IMF_LEN)
    imfs[:, 0, :] += 3.0 * np.sin(2 * np.pi * tt / 15.0)
    imfs[:, 1, :] += 5.0 * np.sin(2 * np.pi * tt / 30.0)
    emd_data = {"imfs": imfs}

    # Parameters exactly as in __init__.
    constant_offset = jnp.zeros((S,), dtype=jnp.float32)
    seasonal_amplitudes = jnp.ones((S, 4), dtype=jnp.float32) * 5.0
    seasonal_phases = (jax.random.uniform(k_phase, (S, 4), dtype=jnp.float32)
                       * 2.0 * np.pi)
    linear_trend = ps00_rates

    # Neighbor graph -> dense weight matrix, EMD bounds (host glue).
    # TODO(synk): sklearn NearestNeighbors / EMD IMF analysis have no Pallas
    # equivalent; they are host-side init-time preprocessing, done in numpy.
    nbr_idx, nbr_w = build_neighbor_graph(coordinates, K)
    W = jnp.asarray(dense_neighbor_matrix(nbr_idx, nbr_w))
    bmin_np = np.zeros((S, 4), dtype=np.float32)
    bmax_np = np.zeros((S, 4), dtype=np.float32)
    for p in range(4):
        b = get_emd_amplitude_bounds(emd_data["imfs"], S, p)
        bmin_np[:, p] = [lo for lo, _ in b]
        bmax_np[:, p] = [hi for _, hi in b]
    bmin = jnp.asarray(bmin_np)
    bmax = jnp.asarray(bmax_np)

    # Time vector (years, ~6-day sampling).
    time_vector = jnp.arange(T, dtype=jnp.float32) * (6.0 / 365.25)

    fwd = jax.jit(emd_insar_forward, static_argnames=("out_dtype",))
    out = jax.block_until_ready(
        fwd(W, seasonal_amplitudes, seasonal_phases,
            bmin, bmax, constant_offset, linear_trend, time_vector))

    ref = reference_forward_np(W, seasonal_amplitudes, seasonal_phases,
                               bmin, bmax, constant_offset, linear_trend,
                               time_vector)
    np.testing.assert_allclose(np.asarray(out, dtype=np.float64), ref,
                               rtol=1e-3, atol=1e-3)
    print("KERNEL_OK")
</pallas_src>

<mosaic_0001>
module attributes {stable_mosaic.version = 11 : i64} {
  func.func @coeff_kernel(%arg0: i32, %arg1: i32, %arg2: memref<128x128xf32, #tpu.memory_space<vmem>>, %arg3: memref<128x22xf32, #tpu.memory_space<vmem>>, %arg4: memref<128x12xf32, #tpu.memory_space<vmem>>, %arg5: memref<128x16xf32, #tpu.memory_space<vmem>>, %arg6: memref<128x12xf32, #tpu.memory_space<vmem>>) attributes {dimension_semantics = [#tpu.dimension_semantics<parallel>, #tpu.dimension_semantics<arbitrary>], iteration_bounds = array<i64: 1, 1>, scalar_prefetch = 0 : i64, scratch_operands = 1 : i64, tpu.core_type = #tpu.core_type<tc>, window_params = [{transform_indices = @transform_0, window_bounds = array<i64: 128, 128>}, {transform_indices = @transform_1, window_bounds = array<i64: 128, 22>}, {transform_indices = @transform_2, window_bounds = array<i64: 128, 12>}, {transform_indices = @transform_3, window_bounds = array<i64: 128, 16>}]} {
    %c0_i32 = arith.constant 0 : i32
    %0 = arith.cmpi eq, %arg1, %c0_i32 : i32
    %1 = arith.extui %0 : i1 to i32
    %c0_i32_0 = arith.constant 0 : i32
    %2 = arith.cmpi ne, %1, %c0_i32_0 : i32
    scf.if %2 {
      %cst_10 = arith.constant 0.000000e+00 : f32
      %12 = vector.broadcast %cst_10 : f32 to vector<128x12xf32>
      %c0_11 = arith.constant 0 : index
      %c0_12 = arith.constant 0 : index
      %13 = vector.load %arg6[%c0_11, %c0_12] : memref<128x12xf32, #tpu.memory_space<vmem>>, vector<128x12xf32>
      tpu.vector_store %arg6[%c0_11, %c0_12], %12 {strides = array<i32>} : memref<128x12xf32, #tpu.memory_space<vmem>>, vector<128x12xf32>,
    } else {
    }
    %c0 = arith.constant 0 : index
    %c0_1 = arith.constant 0 : index
    %3 = vector.load %arg6[%c0, %c0_1] : memref<128x12xf32, #tpu.memory_space<vmem>>, vector<128x12xf32>
    %c0_2 = arith.constant 0 : index
    %c0_3 = arith.constant 0 : index
    %4 = vector.load %arg2[%c0_2, %c0_3] : memref<128x128xf32, #tpu.memory_space<vmem>>, vector<128x128xf32>
    %c0_4 = arith.constant 0 : index
    %c0_5 = arith.constant 0 : index
    %5 = vector.load %arg4[%c0_4, %c0_5] : memref<128x12xf32, #tpu.memory_space<vmem>>, vector<128x12xf32>
    %cst = arith.constant dense<0.000000e+00> : vector<128x12xf32>
    %6 = tpu.matmul %4, %5, %cst {dimension_numbers = #tpu.dot_dimension_numbers<[1], [0], [0], [1], [0, 0, 1, 1], [], []>} : vector<128x128xf32>, vector<128x12xf32>, vector<128x12xf32> -> vector<128x12xf32>
    %7 = arith.addf %3, %6 : vector<128x12xf32>
    %c0_6 = arith.constant 0 : index
    %c0_7 = arith.constant 0 : index
    %8 = vector.load %arg6[%c0_6, %c0_7] : memref<128x12xf32, #tpu.memory_space<vmem>>, vector<128x12xf32>
    tpu.vector_store %arg6[%c0_6, %c0_7], %7 {strides = array<i32>} : memref<128x12xf32, #tpu.memory_space<vmem>>, vector<128x12xf32>,
    %c0_i32_8 = arith.constant 0 : i32
    %9 = arith.cmpi eq, %arg1, %c0_i32_8 : i32
    %10 = arith.extui %9 : i1 to i32
    %c0_i32_9 = arith.constant 0 : i32
    %11 = arith.cmpi ne, %10, %c0_i32_9 : i32
    scf.if %11 {
      %c0_10 = arith.constant 0 : index
      %c0_11 = arith.constant 0 : index
      %12 = vector.load %arg3[%c0_10, %c0_11] : memref<128x22xf32, #tpu.memory_space<vmem>>, vector<128x22xf32>
      %13 = vector.extract_strided_slice %12 {offsets = [0, 0], sizes = [128, 4], strides = [1, 1]} : vector<128x22xf32> to vector<128x4xf32>
      %14 = vector.extract_strided_slice %12 {offsets = [0, 4], sizes = [128, 4], strides = [1, 1]} : vector<128x22xf32> to vector<128x4xf32>
      %15 = vector.extract_strided_slice %12 {offsets = [0, 8], sizes = [128, 4], strides = [1, 1]} : vector<128x22xf32> to vector<128x4xf32>
      %16 = vector.extract_strided_slice %12 {offsets = [0, 12], sizes = [128, 4], strides = [1, 1]} : vector<128x22xf32> to vector<128x4xf32>
      %17 = vector.extract_strided_slice %12 {offsets = [0, 16], sizes = [128, 4], strides = [1, 1]} : vector<128x22xf32> to vector<128x4xf32>
      %18 = vector.extract_strided_slice %12 {offsets = [0, 20], sizes = [128, 1], strides = [1, 1]} : vector<128x22xf32> to vector<128x1xf32>
      %19 = vector.extract_strided_slice %12 {offsets = [0, 21], sizes = [128, 1], strides = [1, 1]} : vector<128x22xf32> to vector<128x1xf32>
      %c0_12 = arith.constant 0 : index
      %c0_13 = arith.constant 0 : index
      %20 = vector.load %arg6[%c0_12, %c0_13] : memref<128x12xf32, #tpu.memory_space<vmem>>, vector<128x12xf32>
      %21 = vector.extract_strided_slice %20 {offsets = [0, 0], sizes = [128, 4], strides = [1, 1]} : vector<128x12xf32> to vector<128x4xf32>
      %22 = vector.extract_strided_slice %20 {offsets = [0, 4], sizes = [128, 4], strides = [1, 1]} : vector<128x12xf32> to vector<128x4xf32>
      %23 = vector.extract_strided_slice %20 {offsets = [0, 8], sizes = [128, 4], strides = [1, 1]} : vector<128x12xf32> to vector<128x4xf32>
      %cst_14 = arith.constant 8.500000e-01 : f32
      %24 = vector.broadcast %cst_14 : f32 to vector<128x4xf32>
      %25 = arith.mulf %24, %13 : vector<128x4xf32>
      %cst_15 = arith.constant 1.500000e-01 : f32
      %26 = vector.broadcast %cst_15 : f32 to vector<128x4xf32>
      %27 = arith.mulf %26, %21 : vector<128x4xf32>
      %28 = arith.addf %25, %27 : vector<128x4xf32>
      %29 = arith.maximumf %16, %28 : vector<128x4xf32>
      %30 = arith.minimumf %17, %29 : vector<128x4xf32>
      %cst_16 = arith.constant 0.899999976 : f32
      %31 = vector.broadcast %cst_16 : f32 to vector<128x4xf32>
      %32 = arith.mulf %31, %14 : vector<128x4xf32>
      %cst_17 = arith.constant 1.000000e-01 : f32
      %33 = vector.broadcast %cst_17 : f32 to vector<128x4xf32>
      %34 = arith.mulf %33, %22 : vector<128x4xf32>
      %35 = arith.addf %32, %34 : vector<128x4xf32>
      %cst_18 = arith.constant 0.899999976 : f32
      %36 = vector.broadcast %cst_18 : f32 to vector<128x4xf32>
      %37 = arith.mulf %36, %15 : vector<128x4xf32>
      %cst_19 = arith.constant 1.000000e-01 : f32
      %38 = vector.broadcast %cst_19 : f32 to vector<128x4xf32>
      %39 = arith.mulf %38, %23 : vector<128x4xf32>
      %40 = arith.addf %37, %39 : vector<128x4xf32>
      %41 = arith.mulf %35, %35 : vector<128x4xf32>
      %42 = arith.mulf %40, %40 : vector<128x4xf32>
      %43 = arith.addf %41, %42 : vector<128x4xf32>
      %cst_20 = arith.constant 9.99999996E-13 : f32
      %44 = vector.broadcast %cst_20 : f32 to vector<128x4xf32>
      %45 = arith.addf %43, %44 : vector<128x4xf32>
      %46 = math.rsqrt %45 : vector<128x4xf32>
      %47 = arith.mulf %35, %46 : vector<128x4xf32>
      %48 = arith.mulf %40, %46 : vector<128x4xf32>
      %cst_21 = arith.constant 0.000000e+00 : f32
      %49 = vector.broadcast %cst_21 : f32 to vector<128x6xf32>
      %50 = arith.mulf %30, %47 : vector<128x4xf32>
      %51 = arith.mulf %30, %48 : vector<128x4xf32>
      %52 = tpu.concatenate %18, %19, %50, %51, %49 in 1 : vector<128x1xf32>, vector<128x1xf32>, vector<128x4xf32>, vector<128x4xf32>, vector<128x6xf32> -> vector<128x16xf32>
      %c0_22 = arith.constant 0 : index
      %c0_23 = arith.constant 0 : index
      %53 = vector.load %arg5[%c0_22, %c0_23] : memref<128x16xf32, #tpu.memory_space<vmem>>, vector<128x16xf32>
      tpu.vector_store %arg5[%c0_22, %c0_23], %52 {strides = array<i32>} : memref<128x16xf32, #tpu.memory_space<vmem>>, vector<128x16xf32>,
    } else {
    }
    return
  }
  func.func @transform_0(%arg0: i32, %arg1: i32) -> (i32, i32) {
    %c0_i32 = arith.constant 0 : i32
    return %arg0, %arg1 : i32, i32
  }
  func.func @transform_1(%arg0: i32, %arg1: i32) -> (i32, i32) {
    %c0_i32 = arith.constant 0 : i32
    %c0_i32_0 = arith.constant 0 : i32
    return %arg0, %c0_i32 : i32, i32
  }
  func.func @transform_2(%arg0: i32, %arg1: i32) -> (i32, i32) {
    %c0_i32 = arith.constant 0 : i32
    %c0_i32_0 = arith.constant 0 : i32
    return %arg1, %c0_i32 : i32, i32
  }
  func.func @transform_3(%arg0: i32, %arg1: i32) -> (i32, i32) {
    %c0_i32 = arith.constant 0 : i32
    %c0_i32_0 = arith.constant 0 : i32
    return %arg0, %c0_i32 : i32, i32
  }
}

module attributes {stable_mosaic.version = 11 : i64} {
  func.func @synth_kernel(%arg0: i32, %arg1: i32, %arg2: memref<64x16xf32, #tpu.memory_space<vmem>>, %arg3: memref<16x128xf32, #tpu.memory_space<vmem>>, %arg4: memref<64x128xf32, #tpu.memory_space<vmem>>) attributes {dimension_semantics = [#tpu.dimension_semantics<parallel>, #tpu.dimension_semantics<parallel>], iteration_bounds = array<i64: 2, 1>, scalar_prefetch = 0 : i64, scratch_operands = 0 : i64, tpu.core_type = #tpu.core_type<tc>, window_params = [{transform_indices = @transform_0, window_bounds = array<i64: 64, 16>}, {transform_indices = @transform_1, window_bounds = array<i64: 16, 128>}, {transform_indices = @transform_2, window_bounds = array<i64: 64, 128>}]} {
    %c0 = arith.constant 0 : index
    %c0_0 = arith.constant 0 : index
    %0 = vector.load %arg2[%c0, %c0_0] : memref<64x16xf32, #tpu.memory_space<vmem>>, vector<64x16xf32>
    %c0_1 = arith.constant 0 : index
    %c0_2 = arith.constant 0 : index
    %1 = vector.load %arg3[%c0_1, %c0_2] : memref<16x128xf32, #tpu.memory_space<vmem>>, vector<16x128xf32>
    %cst = arith.constant dense<0.000000e+00> : vector<64x128xf32>
    %2 = tpu.matmul %0, %1, %cst {dimension_numbers = #tpu.dot_dimension_numbers<[1], [0], [0], [1], [0, 0, 1, 1], [], []>} : vector<64x16xf32>, vector<16x128xf32>, vector<64x128xf32> -> vector<64x128xf32>
    %c0_3 = arith.constant 0 : index
    %c0_4 = arith.constant 0 : index
    %3 = vector.load %arg4[%c0_3, %c0_4] : memref<64x128xf32, #tpu.memory_space<vmem>>, vector<64x128xf32>
    tpu.vector_store %arg4[%c0_3, %c0_4], %2 {strides = array<i32>} : memref<64x128xf32, #tpu.memory_space<vmem>>, vector<64x128xf32>,
    return
  }
  func.func @transform_0(%arg0: i32, %arg1: i32) -> (i32, i32) {
    %c0_i32 = arith.constant 0 : i32
    %c0_i32_0 = arith.constant 0 : i32
    return %arg0, %c0_i32 : i32, i32
  }
  func.func @transform_1(%arg0: i32, %arg1: i32) -> (i32, i32) {
    %c0_i32 = arith.constant 0 : i32
    %c0_i32_0 = arith.constant 0 : i32
    return %c0_i32, %arg1 : i32, i32
  }
  func.func @transform_2(%arg0: i32, %arg1: i32) -> (i32, i32) {
    %c0_i32 = arith.constant 0 : i32
    return %arg0, %arg1 : i32, i32
  }
}

</mosaic_0001>

<llo_original>
// kernel: emd_insar_forward.3
$region0: #{emd_insar_forward.3}
  #allocation0 [shape = 'u32[]', space=smem, size = 0x4, offset = 0x4, fixed_abs, tag = 'smem constant byte address 0x4 - core index']
  #allocation1 [shape = 'u32[72,128]{1,0:T(1,128)}', space=vmem, size = 0x9000, scoped, tag = 'internal scratch']
  %s0 = inlined_call_operand.vmem [shape: f32[128,16], index: 0, kind: input, shape index: {}]
  %s1 = inlined_call_operand.vmem [shape: f32[16,128], index: 1, kind: input, shape index: {}]
  %s2 = inlined_call_operand.vmem [shape: f32[128,128], index: 2, kind: output, shape index: {}]
  %s3 = sld [smem:[#allocation0]]
  $region41: #{emd_insar_forward.3} parent=0
    _
  %s5 = ssub.s32 1, %s3
  %s6 = scalar_select 0, %s5, %s3
  loop: start=0, step=1, limit=4
  $region2: #{emd_insar_forward.3} parent=0 // loop_pre_header
    _
  $region3: #{emd_insar_forward.3} parent=0 // loop_header
    %s8 = sphi 0, %s12
    %p9 = scmp.ge.s32.totalorder %s8, 4
    %s15 = sphi 0, %s27
    %s16 = sphi 0, %s23
    %s17 = sphi 0, %s15
    %s18 = sphi 0, %s16
    %s19 = sphi 0, %s17
    %s20 = sphi 0, %s18
    %s30 = sphi 0, %s32
    %s33 = sphi 0, %s30
    %s34 = sphi 0, %s33
    %s50 = sphi 0, %s34
    %s56 = sphi 0, %s58
    %s59 = sphi 0, %s56
    %s60 = sphi 0, %s59
    %s76 = sphi 0, %s60
    %s84 = sphi 0, %s86
    %s87 = sphi 0, %s84
    %s88 = sphi 0, %s87
    %s104 = sphi 0, %s88
  $region4: #{emd_insar_forward.3} parent=0 // loop_header_branch
    %11 = sbr.rel (%p9) target = $region8
  $region5: #{emd_insar_forward.3} parent=0 // loop_body
    %s13 = ssub.s32 %s8, 1
    %s14 = ssub.s32 %s8, 2
    %s21 = sadd.s32 1, %s16
    %p22 = scmp.ge.s32.totalorder %s21, 1
    %s23 = scalar_select %p22, 0, %s21
    %s24 = sadd.s32 1, %s15
    %s25 = scalar_select %p22, %s24, %s15
    %p26 = scmp.ge.s32.totalorder %s25, 2
    %s27 = scalar_select %p26, 0, %s25
    %s28 = ssub.s32 %s15, %s27
    %p29 = scmp.eq.s32.totalorder %s28, 0
    %s31 = sadd.s32 %s30, 1
    %s32 = scalar_select %p29, %s30, %s31
    %p35 = pneg %p29
    %p36 = scmp.eq.s32.totalorder %s8, 1
    %p37 = por %p35, %p36
    %p38 = scmp.ne.s32.totalorder %s30, %s33
    %p39 = scmp.eq.s32.totalorder %s8, 0
    %p40 = por %p38, %p39
    %p41 = scmp.ne.s32.totalorder %s30, %s33
    %p42 = scmp.eq.s32.totalorder %s13, 1
    %p43 = por %p41, %p42
    %p44 = scmp.ne.s32.totalorder %s33, %s34
    %p45 = scmp.eq.s32.totalorder %s13, 0
    %p46 = por %p44, %p45
    %p47 = scmp.ne.s32.totalorder %s33, %s34
    %p48 = scmp.eq.s32.totalorder %s14, 1
    %p49 = por %p47, %p48
    %p51 = scmp.ne.s32.totalorder %s34, %s50
    %p52 = scmp.eq.s32.totalorder %s14, 0
    %p53 = por %p51, %p52
    %s54 = ssub.s32 %s16, %s23
    %p55 = scmp.eq.s32.totalorder %s54, 0
    %s57 = sadd.s32 %s56, 1
    %s58 = scalar_select %p55, %s56, %s57
    %p61 = pneg %p55
    %p62 = scmp.eq.s32.totalorder %s8, 1
    %p63 = por %p61, %p62
    %p64 = scmp.ne.s32.totalorder %s56, %s59
    %p65 = scmp.eq.s32.totalorder %s8, 0
    %p66 = por %p64, %p65
    %p67 = scmp.ne.s32.totalorder %s56, %s59
    %p68 = scmp.eq.s32.totalorder %s13, 1
    %p69 = por %p67, %p68
    %p70 = scmp.ne.s32.totalorder %s59, %s60
    %p71 = scmp.eq.s32.totalorder %s13, 0
    %p72 = por %p70, %p71
    %p73 = scmp.ne.s32.totalorder %s59, %s60
    %p74 = scmp.eq.s32.totalorder %s14, 1
    %p75 = por %p73, %p74
    %p77 = scmp.ne.s32.totalorder %s60, %s76
    %p78 = scmp.eq.s32.totalorder %s14, 0
    %p79 = por %p77, %p78
    %s80 = ssub.s32 %s15, %s27
    %s81 = ssub.s32 %s16, %s23
    %s82 = sor.u32 %s80, %s81
    %p83 = scmp.eq.s32.totalorder %s82, 0
    %s85 = sadd.s32 %s84, 1
    %s86 = scalar_select %p83, %s84, %s85
    %p89 = pneg %p83
    %p90 = scmp.eq.s32.totalorder %s8, 1
    %p91 = por %p89, %p90
    %p92 = scmp.ne.s32.totalorder %s84, %s87
    %p93 = scmp.eq.s32.totalorder %s8, 0
    %p94 = por %p92, %p93
    %p95 = scmp.ne.s32.totalorder %s84, %s87
    %p96 = scmp.eq.s32.totalorder %s13, 1
    %p97 = por %p95, %p96
    %p98 = scmp.ne.s32.totalorder %s87, %s88
    %p99 = scmp.eq.s32.totalorder %s13, 0
    %p100 = por %p98, %p99
    %p101 = scmp.ne.s32.totalorder %s87, %s88
    %p102 = scmp.eq.s32.totalorder %s14, 1
    %p103 = por %p101, %p102
    %p105 = scmp.ne.s32.totalorder %s88, %s104
    %p106 = scmp.eq.s32.totalorder %s14, 0
    %p107 = por %p105, %p106
    %p108 = scmp.le.s32.totalorder 1, %s8
    %p109 = scmp.lt.s32.totalorder %s8, 3
    %p110 = pnand %p108, %p109
    %p111 = pneg %p110
    // Predicated region
    $region9: #{emd_insar_forward.3} parent=5 // pred_check
      _
    $region10: #{emd_insar_forward.3} parent=5 // pred_check_branch
      %113 = sbr.rel (%p110) target = $region12
    $region11: #{emd_insar_forward.3} parent=5 // pred_region
      %s114 = ssub.s32 %s8, 1
      // Predicated region
      $region13: #{emd_insar_forward.3} parent=11 // pred_check
        %p115 = pneg %p72
      $region14: #{emd_insar_forward.3} parent=11 // pred_check_branch
        %117 = sbr.rel (%p115) target = $region16
      $region15: #{emd_insar_forward.3} parent=11 // pred_region
        %p118 = scmp.lt.s32.totalorder %s18, 0
        %s119 = scalar_select %p118, %s18, 0
        %s120 = smul.addr %s119, 8
        %s121 = scalar_lea.vmem %s1, %s120
      $region16: #{emd_insar_forward.3} parent=11 // pred_fallthru
        _
    $region12: #{emd_insar_forward.3} parent=5 // pred_fallthru
      _
    %p122 = scmp.lt.s32.totalorder %s8, 2
    // Predicated region
    $region17: #{emd_insar_forward.3} parent=5 // pred_check
      %p123 = pneg %p122
    $region18: #{emd_insar_forward.3} parent=5 // pred_check_branch
      %125 = sbr.rel (%p123) target = $region20
    $region19: #{emd_insar_forward.3} parent=5 // pred_region
      // Predicated region
      $region21: #{emd_insar_forward.3} parent=19 // pred_check
        %p126 = pneg %p40
      $region22: #{emd_insar_forward.3} parent=19 // pred_check_branch
        %128 = sbr.rel (%p126) target = $region24
      $region23: #{emd_insar_forward.3} parent=19 // pred_region
        %s129 = smul.u32 8, %s15
        %p130 = scmp.lt.s32.totalorder %s129, 15
        %s131 = scalar_select %p130, %s129, 15
        %s132 = smul.addr %s131, 8
        %s133 = scalar_lea.vmem %s0, %s132
        %s134 = smul.u32 8, %s15
      $region24: #{emd_insar_forward.3} parent=19 // pred_fallthru
        _
    $region20: #{emd_insar_forward.3} parent=5 // pred_fallthru
      _
    %p135 = scmp.le.s32.totalorder 1, %s8
    %p136 = scmp.lt.s32.totalorder %s8, 3
    %p137 = pnand %p135, %p136
    %p138 = pneg %p137
    // Predicated region
    $region25: #{emd_insar_forward.3} parent=5 // pred_check
      _
    $region26: #{emd_insar_forward.3} parent=5 // pred_check_branch
      %140 = sbr.rel (%p137) target = $region28
    $region27: #{emd_insar_forward.3} parent=5 // pred_region
      %s141 = ssub.s32 %s8, 1
      %s142 = smul.u32 8, %s17
      %p143 = scmp.lt.s32.totalorder %s142, 15
      %s144 = scalar_select %p143, %s142, 15
      %s145 = smul.addr %s144, 8
      %s146 = scalar_lea.vmem %s0, %s145
      %p147 = pneg %p46
      %p148 = pneg %p43
      %p149 = scmp.lt.s32.totalorder %s18, 0
      %s150 = scalar_select %p149, %s18, 0
      %s151 = smul.addr %s150, 8
      %s152 = scalar_lea.vmem %s1, %s151
      %p153 = pneg %p72
      %p154 = pneg %p69
      %p155 = pneg %p100
      %p156 = pneg %p97
      %s157 = smul.u32 8, %s17
      %p158 = scmp.lt.s32.totalorder %s157, 15
      %s159 = scalar_select %p158, %s157, 15
      %p160 = scmp.lt.s32.totalorder %s18, 0
      %s161 = scalar_select %p160, %s18, 0
      %s162 = sadd.s32 %s161, %s159
      %s163 = smul.addr %s162, 8
      %s164 = scalar_lea.vmem %s2, %s163
      %s165 = smul.u32 8, %s17
      %p166 = scmp.lt.s32.totalorder %s165, 15
      %s167 = scalar_select %p166, %s165, 15
      %s168 = smul.addr %s167, 8
      %s169 = scalar_lea.vmem %s0, %s168
      %s170 = smul.u32 8, %s17
      %p171 = scmp.lt.s32.totalorder %s18, 0
      %s172 = scalar_select %p171, %s18, 0
      %s173 = smul.addr %s172, 8
      %s174 = scalar_lea.vmem %s1, %s173
      %s175 = smul.u32 8, %s17
      %p176 = scmp.lt.s32.totalorder %s175, 15
      %s177 = scalar_select %p176, %s175, 15
      %p178 = scmp.lt.s32.totalorder %s18, 0
      %s179 = scalar_select %p178, %s18, 0
      %s180 = sadd.s32 %s179, %s177
      %s181 = smul.addr %s180, 8
      %s182 = scalar_lea.vmem %s2, %s181
      %s183 = smul.u32 8, %s17
      %v184 = vld [vmem:[%s169] sm:$0xff]
      %v185 = vld [vmem:[%s169 + $0x8] sm:$0xff]
      %v186 = vld [vmem:[%s169 + $0x10] sm:$0xff]
      %v187 = vld [vmem:[%s169 + $0x18] sm:$0xff]
      %v188 = vld [vmem:[%s169 + $0x20] sm:$0xff]
      %v189 = vld [vmem:[%s169 + $0x28] sm:$0xff]
      %v190 = vld [vmem:[%s169 + $0x30] sm:$0xff]
      %v191 = vld [vmem:[%s169 + $0x38] sm:$0xff]
      %v192 = vld [vmem:[%s174] sm:$0xff]
      %v193 = vld [vmem:[%s174 + $0x8] sm:$0xff]
      %vm194 = vcmask 130048
      %v196 = vsel %vm194, %v184, 0
      %v199 = vsel %vm194, %v185, 0
      %v202 = vsel %vm194, %v186, 0
      %v205 = vsel %vm194, %v187, 0
      %v208 = vsel %vm194, %v188, 0
      %v211 = vsel %vm194, %v189, 0
      %v214 = vsel %vm194, %v190, 0
      %v217 = vsel %vm194, %v191, 0
      %219 = vmatpush.msra.mxu0 0.0
      %220 = vmatpush.msra.mxu0 0.0
      %221 = vmatpush.msra.mxu0 0.0
      %222 = vmatpush.msra.mxu0 0.0
      %223 = vmatpush.msra.mxu0 0.0
      %224 = vmatpush.msra.mxu0 0.0
      %225 = vmatpush.msra.mxu0 0.0
      %226 = vmatpush.msra.mxu0 0.0
      %227 = vmatpush.msra.mxu0 0.0
      %228 = vmatpush.msra.mxu0 0.0
      %229 = vmatpush.msra.mxu0 0.0
      %230 = vmatpush.msra.mxu0 0.0
      %231 = vmatpush.msra.mxu0 0.0
      %232 = vmatpush.msra.mxu0 0.0
      %233 = vmatpush.msra.mxu0 %v193
      %234 = vmatpush.msra.mxu0 %v192
      %235 = vmatmul.f32.gmra.mxu0 %v196
      %v236 = vpop.f32.mrf.mxu0
      %v237 = vadd.f32 0.0, %v236
      %238 = vmatmul.f32.gmra.mxu0 %v199
      %v239 = vpop.f32.mrf.mxu0
      %v240 = vadd.f32 0.0, %v239
      %241 = vmatmul.f32.gmra.mxu0 %v202
      %v242 = vpop.f32.mrf.mxu0
      %v243 = vadd.f32 0.0, %v242
      %244 = vmatmul.f32.gmra.mxu0 %v205
      %v245 = vpop.f32.mrf.mxu0
      %v246 = vadd.f32 0.0, %v245
      %247 = vmatmul.f32.gmra.mxu0 %v208
      %v248 = vpop.f32.mrf.mxu0
      %v249 = vadd.f32 0.0, %v248
      %250 = vmatmul.f32.gmra.mxu0 %v211
      %v251 = vpop.f32.mrf.mxu0
      %v252 = vadd.f32 0.0, %v251
      %253 = vmatmul.f32.gmra.mxu0 %v214
      %v254 = vpop.f32.mrf.mxu0
      %v255 = vadd.f32 0.0, %v254
      %256 = vmatmul.f32.gmra.mxu0 %v217
      %v257 = vpop.f32.mrf.mxu0
      %v258 = vadd.f32 0.0, %v257
      %259 = vdwg.mxu0
      %260 = vst [vmem:[%s182] sm:$0xff] %v237
      %261 = vst [vmem:[%s182 + $0x8] sm:$0xff] %v240
      %262 = vst [vmem:[%s182 + $0x10] sm:$0xff] %v243
      %263 = vst [vmem:[%s182 + $0x18] sm:$0xff] %v246
      %264 = vst [vmem:[%s182 + $0x20] sm:$0xff] %v249
      %265 = vst [vmem:[%s182 + $0x28] sm:$0xff] %v252
      %266 = vst [vmem:[%s182 + $0x30] sm:$0xff] %v255
      %267 = vst [vmem:[%s182 + $0x38] sm:$0xff] %v258
      %s268 = smul.u32 8, %s17
      %p269 = scmp.lt.s32.totalorder %s268, 15
      %s270 = scalar_select %p269, %s268, 15
      %p271 = scmp.lt.s32.totalorder %s18, 0
      %s272 = scalar_select %p271, %s18, 0
      %s273 = sadd.s32 %s272, %s270
      %s274 = smul.addr %s273, 8
      %s275 = scalar_lea.vmem %s2, %s274
      // Predicated region
      $region29: #{emd_insar_forward.3} parent=27 // pred_check
        %p276 = pneg %p97
      $region30: #{emd_insar_forward.3} parent=27 // pred_check_branch
        %278 = sbr.rel (%p276) target = $region32
      $region31: #{emd_insar_forward.3} parent=27 // pred_region
        %s279 = smul.u32 8, %s17
      $region32: #{emd_insar_forward.3} parent=27 // pred_fallthru
        _
    $region28: #{emd_insar_forward.3} parent=5 // pred_fallthru
      _
    %p280 = scmp.le.s32.totalorder 2, %s8
    // Predicated region
    $region33: #{emd_insar_forward.3} parent=5 // pred_check
      %p281 = pneg %p280
    $region34: #{emd_insar_forward.3} parent=5 // pred_check_branch
      %283 = sbr.rel (%p281) target = $region36
    $region35: #{emd_insar_forward.3} parent=5 // pred_region
      %s284 = ssub.s32 %s8, 2
      // Predicated region
      $region37: #{emd_insar_forward.3} parent=35 // pred_check
        %p285 = pneg %p103
      $region38: #{emd_insar_forward.3} parent=35 // pred_check_branch
        %287 = sbr.rel (%p285) target = $region40
      $region39: #{emd_insar_forward.3} parent=35 // pred_region
        %s288 = smul.u32 8, %s19
        %p289 = scmp.lt.s32.totalorder %s288, 15
        %s290 = scalar_select %p289, %s288, 15
        %p291 = scmp.lt.s32.totalorder %s20, 0
        %s292 = scalar_select %p291, %s20, 0
        %s293 = sadd.s32 %s292, %s290
        %s294 = smul.addr %s293, 8
        %s295 = scalar_lea.vmem %s2, %s294
      $region40: #{emd_insar_forward.3} parent=35 // pred_fallthru
        _
    $region36: #{emd_insar_forward.3} parent=5 // pred_fallthru
      _
  $region6: #{emd_insar_forward.3} parent=0 // loop_footer
    %s12 = sadd.s32 1, %s8
  $region7: #{emd_insar_forward.3} parent=0 // loop_footer_branch
    %7 = sbr.rel target = $region3
  $region8: #{emd_insar_forward.3} parent=0 // loop_exit
    _

// kernel: emd_insar_forward.2
$region0: #{emd_insar_forward.2}
  #allocation0 [shape = 'u32[]', space=smem, size = 0x4, offset = 0x4, fixed_abs, tag = 'smem constant byte address 0x4 - core index']
  #allocation1 [shape = 'u32[72,128]{1,0:T(1,128)}', space=vmem, size = 0x9000, scoped, tag = 'internal scratch']
  #allocation2 [shape = 'f32[128,12]{1,0:T(8,128)}', space=vmem, size = 0x10000, scoped, tag = 'scratch operand']
  %s0 = inlined_call_operand.vmem [shape: f32[128,128], index: 0, kind: input, shape index: {}]
  %s1 = inlined_call_operand.vmem [shape: f32[128,22], index: 1, kind: input, shape index: {}]
  %s2 = inlined_call_operand.vmem [shape: f32[128,12], index: 2, kind: input, shape index: {}]
  %s3 = inlined_call_operand.vmem [shape: f32[128,16], index: 3, kind: output, shape index: {}]
  %s4 = sld [smem:[#allocation0]]
  $region30: #{emd_insar_forward.2} parent=0
    _
  %s6 = ssub.s32 1, %s4
  %s7 = scalar_select 0, %s6, %s4
  // Predicated region
  $region2: #{emd_insar_forward.2} parent=0 // pred_check
    _
  $region3: #{emd_insar_forward.2} parent=0 // pred_check_branch
    %9 = sbr.rel (0) target = $region5
  $region4: #{emd_insar_forward.2} parent=0 // pred_region
    _
  $region5: #{emd_insar_forward.2} parent=0 // pred_fallthru
    _
  // Predicated region
  $region6: #{emd_insar_forward.2} parent=0 // pred_check
    _
  $region7: #{emd_insar_forward.2} parent=0 // pred_check_branch
    %11 = sbr.rel (0) target = $region9
  $region8: #{emd_insar_forward.2} parent=0 // pred_region
    _
  $region9: #{emd_insar_forward.2} parent=0 // pred_fallthru
    _
  // Predicated region
  $region10: #{emd_insar_forward.2} parent=0 // pred_check
    _
  $region11: #{emd_insar_forward.2} parent=0 // pred_check_branch
    %13 = sbr.rel (0) target = $region13
  $region12: #{emd_insar_forward.2} parent=0 // pred_region
    _
  $region13: #{emd_insar_forward.2} parent=0 // pred_fallthru
    _
  %p14 = scmp.eq.s32.totalorder 0, 0
  // Predicated region
  $region14: #{emd_insar_forward.2} parent=0 // pred_check
    %p15 = pneg %p14
  $region15: #{emd_insar_forward.2} parent=0 // pred_check_branch
    %17 = sbr.rel (%p15) target = $region17
  $region16: #{emd_insar_forward.2} parent=0 // pred_region
    %vm18 = vcmask 97280
    %19 = vst.msk [vmem:[#allocation2] sm:$0xff] %vm18, 0.0
    %20 = vst.msk [vmem:[#allocation2 + $0x8] sm:$0xff] %vm18, 0.0
    %21 = vst.msk [vmem:[#allocation2 + $0x10] sm:$0xff] %vm18, 0.0
    %22 = vst.msk [vmem:[#allocation2 + $0x18] sm:$0xff] %vm18, 0.0
    %23 = vst.msk [vmem:[#allocation2 + $0x20] sm:$0xff] %vm18, 0.0
    %24 = vst.msk [vmem:[#allocation2 + $0x28] sm:$0xff] %vm18, 0.0
    %25 = vst.msk [vmem:[#allocation2 + $0x30] sm:$0xff] %vm18, 0.0
    %26 = vst.msk [vmem:[#allocation2 + $0x38] sm:$0xff] %vm18, 0.0
    %27 = vst.msk [vmem:[#allocation2 + $0x40] sm:$0xff] %vm18, 0.0
    %28 = vst.msk [vmem:[#allocation2 + $0x48] sm:$0xff] %vm18, 0.0
    %29 = vst.msk [vmem:[#allocation2 + $0x50] sm:$0xff] %vm18, 0.0
    %30 = vst.msk [vmem:[#allocation2 + $0x58] sm:$0xff] %vm18, 0.0
    %31 = vst.msk [vmem:[#allocation2 + $0x60] sm:$0xff] %vm18, 0.0
    %32 = vst.msk [vmem:[#allocation2 + $0x68] sm:$0xff] %vm18, 0.0
    %33 = vst.msk [vmem:[#allocation2 + $0x70] sm:$0xff] %vm18, 0.0
    %34 = vst.msk [vmem:[#allocation2 + $0x78] sm:$0xff] %vm18, 0.0
  $region17: #{emd_insar_forward.2} parent=0 // pred_fallthru
    _
  %v35 = vld [vmem:[#allocation2] sm:$0xff]
  %v36 = vld [vmem:[#allocation2 + $0x8] sm:$0xff]
  %v37 = vld [vmem:[#allocation2 + $0x10] sm:$0xff]
  %v38 = vld [vmem:[#allocation2 + $0x18] sm:$0xff]
  %v39 = vld [vmem:[#allocation2 + $0x20] sm:$0xff]
  %v40 = vld [vmem:[#allocation2 + $0x28] sm:$0xff]
  %v41 = vld [vmem:[#allocation2 + $0x30] sm:$0xff]
  %v42 = vld [vmem:[#allocation2 + $0x38] sm:$0xff]
  %v43 = vld [vmem:[#allocation2 + $0x40] sm:$0xff]
  %v44 = vld [vmem:[#allocation2 + $0x48] sm:$0xff]
  %v45 = vld [vmem:[#allocation2 + $0x50] sm:$0xff]
  %v46 = vld [vmem:[#allocation2 + $0x58] sm:$0xff]
  %v47 = vld [vmem:[#allocation2 + $0x60] sm:$0xff]
  %v48 = vld [vmem:[#allocation2 + $0x68] sm:$0xff]
  %v49 = vld [vmem:[#allocation2 + $0x70] sm:$0xff]
  %v50 = vld [vmem:[#allocation2 + $0x78] sm:$0xff]
  %v51 = vld [vmem:[%s0] sm:$0xff]
  %v52 = vld [vmem:[%s0 + $0x8] sm:$0xff]
  %v53 = vld [vmem:[%s0 + $0x10] sm:$0xff]
  %v54 = vld [vmem:[%s0 + $0x18] sm:$0xff]
  %v55 = vld [vmem:[%s0 + $0x20] sm:$0xff]
  %v56 = vld [vmem:[%s0 + $0x28] sm:$0xff]
  %v57 = vld [vmem:[%s0 + $0x30] sm:$0xff]
  %v58 = vld [vmem:[%s0 + $0x38] sm:$0xff]
  %v59 = vld [vmem:[%s0 + $0x40] sm:$0xff]
  %v60 = vld [vmem:[%s0 + $0x48] sm:$0xff]
  %v61 = vld [vmem:[%s0 + $0x50] sm:$0xff]
  %v62 = vld [vmem:[%s0 + $0x58] sm:$0xff]
  %v63 = vld [vmem:[%s0 + $0x60] sm:$0xff]
  %v64 = vld [vmem:[%s0 + $0x68] sm:$0xff]
  %v65 = vld [vmem:[%s0 + $0x70] sm:$0xff]
  %v66 = vld [vmem:[%s0 + $0x78] sm:$0xff]
  %v67 = vld [vmem:[%s2] sm:$0xff]
  %v68 = vld [vmem:[%s2 + $0x8] sm:$0xff]
  %v69 = vld [vmem:[%s2 + $0x10] sm:$0xff]
  %v70 = vld [vmem:[%s2 + $0x18] sm:$0xff]
  %v71 = vld [vmem:[%s2 + $0x20] sm:$0xff]
  %v72 = vld [vmem:[%s2 + $0x28] sm:$0xff]
  %v73 = vld [vmem:[%s2 + $0x30] sm:$0xff]
  %v74 = vld [vmem:[%s2 + $0x38] sm:$0xff]
  %v75 = vld [vmem:[%s2 + $0x40] sm:$0xff]
  %v76 = vld [vmem:[%s2 + $0x48] sm:$0xff]
  %v77 = vld [vmem:[%s2 + $0x50] sm:$0xff]
  %v78 = vld [vmem:[%s2 + $0x58] sm:$0xff]
  %v79 = vld [vmem:[%s2 + $0x60] sm:$0xff]
  %v80 = vld [vmem:[%s2 + $0x68] sm:$0xff]
  %v81 = vld [vmem:[%s2 + $0x70] sm:$0xff]
  %v82 = vld [vmem:[%s2 + $0x78] sm:$0xff]
  %83 = vmatpush.msra.mxu0 %v82
  %84 = vmatpush.msra.mxu0 %v81
  %85 = vmatpush.msra.mxu0 %v80
  %86 = vmatpush.msra.mxu0 %v79
  %87 = vmatpush.msra.mxu0 %v78
  %88 = vmatpush.msra.mxu0 %v77
  %89 = vmatpush.msra.mxu0 %v76
  %90 = vmatpush.msra.mxu0 %v75
  %91 = vmatpush.msra.mxu0 %v74
  %92 = vmatpush.msra.mxu0 %v73
  %93 = vmatpush.msra.mxu0 %v72
  %94 = vmatpush.msra.mxu0 %v71
  %95 = vmatpush.msra.mxu0 %v70
  %96 = vmatpush.msra.mxu0 %v69
  %97 = vmatpush.msra.mxu0 %v68
  %98 = vmatpush.msra.mxu0 %v67
  %99 = vmatmul.f32.gmra.mxu0 %v51
  %v100 = vpop.f32.mrf.mxu0
  %v101 = vadd.f32 0.0, %v100
  %102 = vmatmul.f32.gmra.mxu0 %v52
  %v103 = vpop.f32.mrf.mxu0
  %v104 = vadd.f32 0.0, %v103
  %105 = vmatmul.f32.gmra.mxu0 %v53
  %v106 = vpop.f32.mrf.mxu0
  %v107 = vadd.f32 0.0, %v106
  %108 = vmatmul.f32.gmra.mxu0 %v54
  %v109 = vpop.f32.mrf.mxu0
  %v110 = vadd.f32 0.0, %v109
  %111 = vmatmul.f32.gmra.mxu0 %v55
  %v112 = vpop.f32.mrf.mxu0
  %v113 = vadd.f32 0.0, %v112
  %114 = vmatmul.f32.gmra.mxu0 %v56
  %v115 = vpop.f32.mrf.mxu0
  %v116 = vadd.f32 0.0, %v115
  %117 = vmatmul.f32.gmra.mxu0 %v57
  %v118 = vpop.f32.mrf.mxu0
  %v119 = vadd.f32 0.0, %v118
  %120 = vmatmul.f32.gmra.mxu0 %v58
  %v121 = vpop.f32.mrf.mxu0
  %v122 = vadd.f32 0.0, %v121
  %123 = vmatmul.f32.gmra.mxu0 %v59
  %v124 = vpop.f32.mrf.mxu0
  %v125 = vadd.f32 0.0, %v124
  %126 = vmatmul.f32.gmra.mxu0 %v60
  %v127 = vpop.f32.mrf.mxu0
  %v128 = vadd.f32 0.0, %v127
  %129 = vmatmul.f32.gmra.mxu0 %v61
  %v130 = vpop.f32.mrf.mxu0
  %v131 = vadd.f32 0.0, %v130
  %132 = vmatmul.f32.gmra.mxu0 %v62
  %v133 = vpop.f32.mrf.mxu0
  %v134 = vadd.f32 0.0, %v133
  %135 = vmatmul.f32.gmra.mxu0 %v63
  %v136 = vpop.f32.mrf.mxu0
  %v137 = vadd.f32 0.0, %v136
  %138 = vmatmul.f32.gmra.mxu0 %v64
  %v139 = vpop.f32.mrf.mxu0
  %v140 = vadd.f32 0.0, %v139
  %141 = vmatmul.f32.gmra.mxu0 %v65
  %v142 = vpop.f32.mrf.mxu0
  %v143 = vadd.f32 0.0, %v142
  %144 = vmatmul.f32.gmra.mxu0 %v66
  %v145 = vpop.f32.mrf.mxu0
  %v146 = vadd.f32 0.0, %v145
  %147 = vdwg.mxu0
  %v148 = vadd.f32 %v35, %v101
  %v149 = vadd.f32 %v36, %v104
  %v150 = vadd.f32 %v37, %v107
  %v151 = vadd.f32 %v38, %v110
  %v152 = vadd.f32 %v39, %v113
  %v153 = vadd.f32 %v40, %v116
  %v154 = vadd.f32 %v41, %v119
  %v155 = vadd.f32 %v42, %v122
  %v156 = vadd.f32 %v43, %v125
  %v157 = vadd.f32 %v44, %v128
  %v158 = vadd.f32 %v45, %v131
  %v159 = vadd.f32 %v46, %v134
  %v160 = vadd.f32 %v47, %v137
  %v161 = vadd.f32 %v48, %v140
  %v162 = vadd.f32 %v49, %v143
  %v163 = vadd.f32 %v50, %v146
  %vm164 = vcmask 97280
  %165 = vst.msk [vmem:[#allocation2] sm:$0xff] %vm164, %v148
  %166 = vst.msk [vmem:[#allocation2 + $0x8] sm:$0xff] %vm164, %v149
  %167 = vst.msk [vmem:[#allocation2 + $0x10] sm:$0xff] %vm164, %v150
  %168 = vst.msk [vmem:[#allocation2 + $0x18] sm:$0xff] %vm164, %v151
  %169 = vst.msk [vmem:[#allocation2 + $0x20] sm:$0xff] %vm164, %v152
  %170 = vst.msk [vmem:[#allocation2 + $0x28] sm:$0xff] %vm164, %v153
  %171 = vst.msk [vmem:[#allocation2 + $0x30] sm:$0xff] %vm164, %v154
  %172 = vst.msk [vmem:[#allocation2 + $0x38] sm:$0xff] %vm164, %v155
  %173 = vst.msk [vmem:[#allocation2 + $0x40] sm:$0xff] %vm164, %v156
  %174 = vst.msk [vmem:[#allocation2 + $0x48] sm:$0xff] %vm164, %v157
  %175 = vst.msk [vmem:[#allocation2 + $0x50] sm:$0xff] %vm164, %v158
  %176 = vst.msk [vmem:[#allocation2 + $0x58] sm:$0xff] %vm164, %v159
  %177 = vst.msk [vmem:[#allocation2 + $0x60] sm:$0xff] %vm164, %v160
  %178 = vst.msk [vmem:[#allocation2 + $0x68] sm:$0xff] %vm164, %v161
  %179 = vst.msk [vmem:[#allocation2 + $0x70] sm:$0xff] %vm164, %v162
  %180 = vst.msk [vmem:[#allocation2 + $0x78] sm:$0xff] %vm164, %v163
  // Predicated region
  $region18: #{emd_insar_forward.2} parent=0 // pred_check
    %p181 = pneg %p14
  $region19: #{emd_insar_forward.2} parent=0 // pred_check_branch
    %183 = sbr.rel (%p181) target = $region21
  $region20: #{emd_insar_forward.2} parent=0 // pred_region
    %v184 = vld [vmem:[%s1] sm:$0xff]
    %v185 = vld [vmem:[%s1 + $0x8] sm:$0xff]
    %v186 = vld [vmem:[%s1 + $0x10] sm:$0xff]
    %v187 = vld [vmem:[%s1 + $0x18] sm:$0xff]
    %v188 = vld [vmem:[%s1 + $0x20] sm:$0xff]
    %v189 = vld [vmem:[%s1 + $0x28] sm:$0xff]
    %v190 = vld [vmem:[%s1 + $0x30] sm:$0xff]
    %v191 = vld [vmem:[%s1 + $0x38] sm:$0xff]
    %v192 = vld [vmem:[%s1 + $0x40] sm:$0xff]
    %v193 = vld [vmem:[%s1 + $0x48] sm:$0xff]
    %v194 = vld [vmem:[%s1 + $0x50] sm:$0xff]
    %v195 = vld [vmem:[%s1 + $0x58] sm:$0xff]
    %v196 = vld [vmem:[%s1 + $0x60] sm:$0xff]
    %v197 = vld [vmem:[%s1 + $0x68] sm:$0xff]
    %v198 = vld [vmem:[%s1 + $0x70] sm:$0xff]
    %v199 = vld [vmem:[%s1 + $0x78] sm:$0xff]
    %v200 = vld [vmem:[#allocation2] sm:$0xff]
    %v201 = vld [vmem:[#allocation2 + $0x8] sm:$0xff]
    %v202 = vld [vmem:[#allocation2 + $0x10] sm:$0xff]
    %v203 = vld [vmem:[#allocation2 + $0x18] sm:$0xff]
    %v204 = vld [vmem:[#allocation2 + $0x20] sm:$0xff]
    %v205 = vld [vmem:[#allocation2 + $0x28] sm:$0xff]
    %v206 = vld [vmem:[#allocation2 + $0x30] sm:$0xff]
    %v207 = vld [vmem:[#allocation2 + $0x38] sm:$0xff]
    %v208 = vld [vmem:[#allocation2 + $0x40] sm:$0xff]
    %v209 = vld [vmem:[#allocation2 + $0x48] sm:$0xff]
    %v210 = vld [vmem:[#allocation2 + $0x50] sm:$0xff]
    %v211 = vld [vmem:[#allocation2 + $0x58] sm:$0xff]
    %v212 = vld [vmem:[#allocation2 + $0x60] sm:$0xff]
    %v213 = vld [vmem:[#allocation2 + $0x68] sm:$0xff]
    %v214 = vld [vmem:[#allocation2 + $0x70] sm:$0xff]
    %v215 = vld [vmem:[#allocation2 + $0x78] sm:$0xff]
    %v216 = vmul.f32 %v184, 0.85
    %v217 = vmul.f32 %v185, 0.85
    %v218 = vmul.f32 %v186, 0.85
    %v219 = vmul.f32 %v187, 0.85
    %v220 = vmul.f32 %v188, 0.85
    %v221 = vmul.f32 %v189, 0.85
    %v222 = vmul.f32 %v190, 0.85
    %v223 = vmul.f32 %v191, 0.85
    %v224 = vmul.f32 %v192, 0.85
    %v225 = vmul.f32 %v193, 0.85
    %v226 = vmul.f32 %v194, 0.85
    %v227 = vmul.f32 %v195, 0.85
    %v228 = vmul.f32 %v196, 0.85
    %v229 = vmul.f32 %v197, 0.85
    %v230 = vmul.f32 %v198, 0.85
    %v231 = vmul.f32 %v199, 0.85
    %v232 = vmul.f32 %v200, 0.15
    %v233 = vmul.f32 %v201, 0.15
    %v234 = vmul.f32 %v202, 0.15
    %v235 = vmul.f32 %v203, 0.15
    %v236 = vmul.f32 %v204, 0.15
    %v237 = vmul.f32 %v205, 0.15
    %v238 = vmul.f32 %v206, 0.15
    %v239 = vmul.f32 %v207, 0.15
    %v240 = vmul.f32 %v208, 0.15
    %v241 = vmul.f32 %v209, 0.15
    %v242 = vmul.f32 %v210, 0.15
    %v243 = vmul.f32 %v211, 0.15
    %v244 = vmul.f32 %v212, 0.15
    %v245 = vmul.f32 %v213, 0.15
    %v246 = vmul.f32 %v214, 0.15
    %v247 = vmul.f32 %v215, 0.15
    %v248 = vadd.f32 %v216, %v232
    %v249 = vadd.f32 %v217, %v233
    %v250 = vadd.f32 %v218, %v234
    %v251 = vadd.f32 %v219, %v235
    %v252 = vadd.f32 %v220, %v236
    %v253 = vadd.f32 %v221, %v237
    %v254 = vadd.f32 %v222, %v238
    %v255 = vadd.f32 %v223, %v239
    %v256 = vadd.f32 %v224, %v240
    %v257 = vadd.f32 %v225, %v241
    %v258 = vadd.f32 %v226, %v242
    %v259 = vadd.f32 %v227, %v243
    %v260 = vadd.f32 %v228, %v244
    %v261 = vadd.f32 %v229, %v245
    %v262 = vadd.f32 %v230, %v246
    %v263 = vadd.f32 %v231, %v247
    %280 = vrot.lane.b32.xlu0 %v248, 12
    %v281 = vpop.permute.xlu0 %280
    %282 = vrot.lane.b32.xlu0 %v249, 12
    %v283 = vpop.permute.xlu0 %282
    %284 = vrot.lane.b32.xlu0 %v250, 12
    %v285 = vpop.permute.xlu0 %284
    %286 = vrot.lane.b32.xlu0 %v251, 12
    %v287 = vpop.permute.xlu0 %286
    %288 = vrot.lane.b32.xlu0 %v252, 12
    %v289 = vpop.permute.xlu0 %288
    %290 = vrot.lane.b32.xlu0 %v253, 12
    %v291 = vpop.permute.xlu0 %290
    %292 = vrot.lane.b32.xlu0 %v254, 12
    %v293 = vpop.permute.xlu0 %292
    %294 = vrot.lane.b32.xlu0 %v255, 12
    %v295 = vpop.permute.xlu0 %294
    %296 = vrot.lane.b32.xlu0 %v256, 12
    %v297 = vpop.permute.xlu0 %296
    %298 = vrot.lane.b32.xlu0 %v257, 12
    %v299 = vpop.permute.xlu0 %298
    %300 = vrot.lane.b32.xlu0 %v258, 12
    %v301 = vpop.permute.xlu0 %300
    %302 = vrot.lane.b32.xlu0 %v259, 12
    %v303 = vpop.permute.xlu0 %302
    %304 = vrot.lane.b32.xlu0 %v260, 12
    %v305 = vpop.permute.xlu0 %304
    %306 = vrot.lane.b32.xlu0 %v261, 12
    %v307 = vpop.permute.xlu0 %306
    %308 = vrot.lane.b32.xlu0 %v262, 12
    %v309 = vpop.permute.xlu0 %308
    %310 = vrot.lane.b32.xlu0 %v263, 12
    %v311 = vpop.permute.xlu0 %310
    %v328 = vmax.f32 %v184, %v281
    %v329 = vmax.f32 %v185, %v283
    %v330 = vmax.f32 %v186, %v285
    %v331 = vmax.f32 %v187, %v287
    %v332 = vmax.f32 %v188, %v289
    %v333 = vmax.f32 %v189, %v291
    %v334 = vmax.f32 %v190, %v293
    %v335 = vmax.f32 %v191, %v295
    %v336 = vmax.f32 %v192, %v297
    %v337 = vmax.f32 %v193, %v299
    %v338 = vmax.f32 %v194, %v301
    %v339 = vmax.f32 %v195, %v303
    %v340 = vmax.f32 %v196, %v305
    %v341 = vmax.f32 %v197, %v307
    %v342 = vmax.f32 %v198, %v309
    %v343 = vmax.f32 %v199, %v311
    %360 = vrot.lane.b32.xlu0 %v328, 4
    %v361 = vpop.permute.xlu0 %360
    %362 = vrot.lane.b32.xlu0 %v329, 4
    %v363 = vpop.permute.xlu0 %362
    %364 = vrot.lane.b32.xlu0 %v330, 4
    %v365 = vpop.permute.xlu0 %364
    %366 = vrot.lane.b32.xlu0 %v331, 4
    %v367 = vpop.permute.xlu0 %366
    %368 = vrot.lane.b32.xlu0 %v332, 4
    %v369 = vpop.permute.xlu0 %368
    %370 = vrot.lane.b32.xlu0 %v333, 4
    %v371 = vpop.permute.xlu0 %370
    %372 = vrot.lane.b32.xlu0 %v334, 4
    %v373 = vpop.permute.xlu0 %372
    %374 = vrot.lane.b32.xlu0 %v335, 4
    %v375 = vpop.permute.xlu0 %374
    %376 = vrot.lane.b32.xlu0 %v336, 4
    %v377 = vpop.permute.xlu0 %376
    %378 = vrot.lane.b32.xlu0 %v337, 4
    %v379 = vpop.permute.xlu0 %378
    %380 = vrot.lane.b32.xlu0 %v338, 4
    %v381 = vpop.permute.xlu0 %380
    %382 = vrot.lane.b32.xlu0 %v339, 4
    %v383 = vpop.permute.xlu0 %382
    %384 = vrot.lane.b32.xlu0 %v340, 4
    %v385 = vpop.permute.xlu0 %384
    %386 = vrot.lane.b32.xlu0 %v341, 4
    %v387 = vpop.permute.xlu0 %386
    %388 = vrot.lane.b32.xlu0 %v342, 4
    %v389 = vpop.permute.xlu0 %388
    %390 = vrot.lane.b32.xlu0 %v343, 4
    %v391 = vpop.permute.xlu0 %390
    %v408 = vmin.f32 %v184, %v361
    %v409 = vmin.f32 %v185, %v363
    %v410 = vmin.f32 %v186, %v365
    %v411 = vmin.f32 %v187, %v367
    %v412 = vmin.f32 %v188, %v369
    %v413 = vmin.f32 %v189, %v371
    %v414 = vmin.f32 %v190, %v373
    %v415 = vmin.f32 %v191, %v375
    %v416 = vmin.f32 %v192, %v377
    %v417 = vmin.f32 %v193, %v379
    %v418 = vmin.f32 %v194, %v381
    %v419 = vmin.f32 %v195, %v383
    %v420 = vmin.f32 %v196, %v385
    %v421 = vmin.f32 %v197, %v387
    %v422 = vmin.f32 %v198, %v389
    %v423 = vmin.f32 %v199, %v391
    %v424 = vmul.f32 %v184, 0.9
    %v425 = vmul.f32 %v185, 0.9
    %v426 = vmul.f32 %v186, 0.9
    %v427 = vmul.f32 %v187, 0.9
    %v428 = vmul.f32 %v188, 0.9
    %v429 = vmul.f32 %v189, 0.9
    %v430 = vmul.f32 %v190, 0.9
    %v431 = vmul.f32 %v191, 0.9
    %v432 = vmul.f32 %v192, 0.9
    %v433 = vmul.f32 %v193, 0.9
    %v434 = vmul.f32 %v194, 0.9
    %v435 = vmul.f32 %v195, 0.9
    %v436 = vmul.f32 %v196, 0.9
    %v437 = vmul.f32 %v197, 0.9
    %v438 = vmul.f32 %v198, 0.9
    %v439 = vmul.f32 %v199, 0.9
    %v440 = vmul.f32 %v200, 0.1
    %v441 = vmul.f32 %v201, 0.1
    %v442 = vmul.f32 %v202, 0.1
    %v443 = vmul.f32 %v203, 0.1
    %v444 = vmul.f32 %v204, 0.1
    %v445 = vmul.f32 %v205, 0.1
    %v446 = vmul.f32 %v206, 0.1
    %v447 = vmul.f32 %v207, 0.1
    %v448 = vmul.f32 %v208, 0.1
    %v449 = vmul.f32 %v209, 0.1
    %v450 = vmul.f32 %v210, 0.1
    %v451 = vmul.f32 %v211, 0.1
    %v452 = vmul.f32 %v212, 0.1
    %v453 = vmul.f32 %v213, 0.1
    %v454 = vmul.f32 %v214, 0.1
    %v455 = vmul.f32 %v215, 0.1
    %v456 = vadd.f32 %v424, %v440
    %v457 = vadd.f32 %v425, %v441
    %v458 = vadd.f32 %v426, %v442
    %v459 = vadd.f32 %v427, %v443
    %v460 = vadd.f32 %v428, %v444
    %v461 = vadd.f32 %v429, %v445
    %v462 = vadd.f32 %v430, %v446
    %v463 = vadd.f32 %v431, %v447
    %v464 = vadd.f32 %v432, %v448
    %v465 = vadd.f32 %v433, %v449
    %v466 = vadd.f32 %v434, %v450
    %v467 = vadd.f32 %v435, %v451
    %v468 = vadd.f32 %v436, %v452
    %v469 = vadd.f32 %v437, %v453
    %v470 = vadd.f32 %v438, %v454
    %v471 = vadd.f32 %v439, %v455
    %v472 = vmul.f32 %v456, %v456
    %v473 = vmul.f32 %v457, %v457
    %v474 = vmul.f32 %v458, %v458
    %v475 = vmul.f32 %v459, %v459
    %v476 = vmul.f32 %v460, %v460
    %v477 = vmul.f32 %v461, %v461
    %v478 = vmul.f32 %v462, %v462
    %v479 = vmul.f32 %v463, %v463
    %v480 = vmul.f32 %v464, %v464
    %v481 = vmul.f32 %v465, %v465
    %v482 = vmul.f32 %v466, %v466
    %v483 = vmul.f32 %v467, %v467
    %v484 = vmul.f32 %v468, %v468
    %v485 = vmul.f32 %v469, %v469
    %v486 = vmul.f32 %v470, %v470
    %v487 = vmul.f32 %v471, %v471
    %504 = vrot.lane.b32.xlu0 %v472, 124
    %v505 = vpop.permute.xlu0 %504
    %506 = vrot.lane.b32.xlu0 %v473, 124
    %v507 = vpop.permute.xlu0 %506
    %508 = vrot.lane.b32.xlu0 %v474, 124
    %v509 = vpop.permute.xlu0 %508
    %510 = vrot.lane.b32.xlu0 %v475, 124
    %v511 = vpop.permute.xlu0 %510
    %512 = vrot.lane.b32.xlu0 %v476, 124
    %v513 = vpop.permute.xlu0 %512
    %514 = vrot.lane.b32.xlu0 %v477, 124
    %v515 = vpop.permute.xlu0 %514
    %516 = vrot.lane.b32.xlu0 %v478, 124
    %v517 = vpop.permute.xlu0 %516
    %518 = vrot.lane.b32.xlu0 %v479, 124
    %v519 = vpop.permute.xlu0 %518
    %520 = vrot.lane.b32.xlu0 %v480, 124
    %v521 = vpop.permute.xlu0 %520
    %522 = vrot.lane.b32.xlu0 %v481, 124
    %v523 = vpop.permute.xlu0 %522
    %524 = vrot.lane.b32.xlu0 %v482, 124
    %v525 = vpop.permute.xlu0 %524
    %526 = vrot.lane.b32.xlu0 %v483, 124
    %v527 = vpop.permute.xlu0 %526
    %528 = vrot.lane.b32.xlu0 %v484, 124
    %v529 = vpop.permute.xlu0 %528
    %530 = vrot.lane.b32.xlu0 %v485, 124
    %v531 = vpop.permute.xlu0 %530
    %532 = vrot.lane.b32.xlu0 %v486, 124
    %v533 = vpop.permute.xlu0 %532
    %534 = vrot.lane.b32.xlu0 %v487, 124
    %v535 = vpop.permute.xlu0 %534
    %v552 = vadd.f32 %v472, %v505
    %v553 = vadd.f32 %v473, %v507
    %v554 = vadd.f32 %v474, %v509
    %v555 = vadd.f32 %v475, %v511
    %v556 = vadd.f32 %v476, %v513
    %v557 = vadd.f32 %v477, %v515
    %v558 = vadd.f32 %v478, %v517
    %v559 = vadd.f32 %v479, %v519
    %v560 = vadd.f32 %v480, %v521
    %v561 = vadd.f32 %v481, %v523
    %v562 = vadd.f32 %v482, %v525
    %v563 = vadd.f32 %v483, %v527
    %v564 = vadd.f32 %v484, %v529
    %v565 = vadd.f32 %v485, %v531
    %v566 = vadd.f32 %v486, %v533
    %v567 = vadd.f32 %v487, %v535
    %v568 = vadd.f32 %v552, 1e-12
    %v569 = vadd.f32 %v553, 1e-12
    %v570 = vadd.f32 %v554, 1e-12
    %v571 = vadd.f32 %v555, 1e-12
    %v572 = vadd.f32 %v556, 1e-12
    %v573 = vadd.f32 %v557, 1e-12
    %v574 = vadd.f32 %v558, 1e-12
    %v575 = vadd.f32 %v559, 1e-12
    %v576 = vadd.f32 %v560, 1e-12
    %v577 = vadd.f32 %v561, 1e-12
    %v578 = vadd.f32 %v562, 1e-12
    %v579 = vadd.f32 %v563, 1e-12
    %v580 = vadd.f32 %v564, 1e-12
    %v581 = vadd.f32 %v565, 1e-12
    %v582 = vadd.f32 %v566, 1e-12
    %v583 = vadd.f32 %v567, 1e-12
    %v584 = vrsqrt.pop %v568
    %v585 = vmul.f32 %v584, %v568
    %v586 = vmul.f32 %v585, %v584
    %v587 = vmul.f32 0.5, %v586
    %v588 = vsub.f32 1.5, %v587
    %v589 = vmul.f32 %v584, %v588
    %vm590 = vweird.f32 %v568
    %vm591 = vweird.f32 %v584
    %vm592 = vmor %vm590, %vm591
    %v593 = vsel %vm592, %v584, %v589
    %v594 = vrsqrt.pop %v569
    %v595 = vmul.f32 %v594, %v569
    %v596 = vmul.f32 %v595, %v594
    %v597 = vmul.f32 0.5, %v596
    %v598 = vsub.f32 1.5, %v597
    %v599 = vmul.f32 %v594, %v598
    %vm600 = vweird.f32 %v569
    %vm601 = vweird.f32 %v594
    %vm602 = vmor %vm600, %vm601
    %v603 = vsel %vm602, %v594, %v599
    %v604 = vrsqrt.pop %v570
    %v605 = vmul.f32 %v604, %v570
    %v606 = vmul.f32 %v605, %v604
    %v607 = vmul.f32 0.5, %v606
    %v608 = vsub.f32 1.5, %v607
    %v609 = vmul.f32 %v604, %v608
    %vm610 = vweird.f32 %v570
    %vm611 = vweird.f32 %v604
    %vm612 = vmor %vm610, %vm611
    %v613 = vsel %vm612, %v604, %v609
    %v614 = vrsqrt.pop %v571
    %v615 = vmul.f32 %v614, %v571
    %v616 = vmul.f32 %v615, %v614
    %v617 = vmul.f32 0.5, %v616
    %v618 = vsub.f32 1.5, %v617
    %v619 = vmul.f32 %v614, %v618
    %vm620 = vweird.f32 %v571
    %vm621 = vweird.f32 %v614
    %vm622 = vmor %vm620, %vm621
    %v623 = vsel %vm622, %v614, %v619
    %v624 = vrsqrt.pop %v572
    %v625 = vmul.f32 %v624, %v572
    %v626 = vmul.f32 %v625, %v624
    %v627 = vmul.f32 0.5, %v626
    %v628 = vsub.f32 1.5, %v627
    %v629 = vmul.f32 %v624, %v628
    %vm630 = vweird.f32 %v572
    %vm631 = vweird.f32 %v624
    %vm632 = vmor %vm630, %vm631
    %v633 = vsel %vm632, %v624, %v629
    %v634 = vrsqrt.pop %v573
    %v635 = vmul.f32 %v634, %v573
    %v636 = vmul.f32 %v635, %v634
    %v637 = vmul.f32 0.5, %v636
    %v638 = vsub.f32 1.5, %v637
    %v639 = vmul.f32 %v634, %v638
    %vm640 = vweird.f32 %v573
    %vm641 = vweird.f32 %v634
    %vm642 = vmor %vm640, %vm641
    %v643 = vsel %vm642, %v634, %v639
    %v644 = vrsqrt.pop %v574
    %v645 = vmul.f32 %v644, %v574
    %v646 = vmul.f32 %v645, %v644
    %v647 = vmul.f32 0.5, %v646
    %v648 = vsub.f32 1.5, %v647
    %v649 = vmul.f32 %v644, %v648
    %vm650 = vweird.f32 %v574
    %vm651 = vweird.f32 %v644
    %vm652 = vmor %vm650, %vm651
    %v653 = vsel %vm652, %v644, %v649
    %v654 = vrsqrt.pop %v575
    %v655 = vmul.f32 %v654, %v575
    %v656 = vmul.f32 %v655, %v654
    %v657 = vmul.f32 0.5, %v656
    %v658 = vsub.f32 1.5, %v657
    %v659 = vmul.f32 %v654, %v658
    %vm660 = vweird.f32 %v575
    %vm661 = vweird.f32 %v654
    %vm662 = vmor %vm660, %vm661
    %v663 = vsel %vm662, %v654, %v659
    %v664 = vrsqrt.pop %v576
    %v665 = vmul.f32 %v664, %v576
    %v666 = vmul.f32 %v665, %v664
    %v667 = vmul.f32 0.5, %v666
    %v668 = vsub.f32 1.5, %v667
    %v669 = vmul.f32 %v664, %v668
    %vm670 = vweird.f32 %v576
    %vm671 = vweird.f32 %v664
    %vm672 = vmor %vm670, %vm671
    %v673 = vsel %vm672, %v664, %v669
    %v674 = vrsqrt.pop %v577
    %v675 = vmul.f32 %v674, %v577
    %v676 = vmul.f32 %v675, %v674
    %v677 = vmul.f32 0.5, %v676
    %v678 = vsub.f32 1.5, %v677
    %v679 = vmul.f32 %v674, %v678
    %vm680 = vweird.f32 %v577
    %vm681 = vweird.f32 %v674
    %vm682 = vmor %vm680, %vm681
    %v683 = vsel %vm682, %v674, %v679
    %v684 = vrsqrt.pop %v578
    %v685 = vmul.f32 %v684, %v578
    %v686 = vmul.f32 %v685, %v684
    %v687 = vmul.f32 0.5, %v686
    %v688 = vsub.f32 1.5, %v687
    %v689 = vmul.f32 %v684, %v688
    %vm690 = vweird.f32 %v578
    %vm691 = vweird.f32 %v684
    %vm692 = vmor %vm690, %vm691
    %v693 = vsel %vm692, %v684, %v689
    %v694 = vrsqrt.pop %v579
    %v695 = vmul.f32 %v694, %v579
    %v696 = vmul.f32 %v695, %v694
    %v697 = vmul.f32 0.5, %v696
    %v698 = vsub.f32 1.5, %v697
    %v699 = vmul.f32 %v694, %v698
    %vm700 = vweird.f32 %v579
    %vm701 = vweird.f32 %v694
    %vm702 = vmor %vm700, %vm701
    %v703 = vsel %vm702, %v694, %v699
    %v704 = vrsqrt.pop %v580
    %v705 = vmul.f32 %v704, %v580
    %v706 = vmul.f32 %v705, %v704
    %v707 = vmul.f32 0.5, %v706
    %v708 = vsub.f32 1.5, %v707
    %v709 = vmul.f32 %v704, %v708
    %vm710 = vweird.f32 %v580
    %vm711 = vweird.f32 %v704
    %vm712 = vmor %vm710, %vm711
    %v713 = vsel %vm712, %v704, %v709
    %v714 = vrsqrt.pop %v581
    %v715 = vmul.f32 %v714, %v581
    %v716 = vmul.f32 %v715, %v714
    %v717 = vmul.f32 0.5, %v716
    %v718 = vsub.f32 1.5, %v717
    %v719 = vmul.f32 %v714, %v718
    %vm720 = vweird.f32 %v581
    %vm721 = vweird.f32 %v714
    %vm722 = vmor %vm720, %vm721
    %v723 = vsel %vm722, %v714, %v719
    %v724 = vrsqrt.pop %v582
    %v725 = vmul.f32 %v724, %v582
    %v726 = vmul.f32 %v725, %v724
    %v727 = vmul.f32 0.5, %v726
    %v728 = vsub.f32 1.5, %v727
    %v729 = vmul.f32 %v724, %v728
    %vm730 = vweird.f32 %v582
    %vm731 = vweird.f32 %v724
    %vm732 = vmor %vm730, %vm731
    %v733 = vsel %vm732, %v724, %v729
    %v734 = vrsqrt.pop %v583
    %v735 = vmul.f32 %v734, %v583
    %v736 = vmul.f32 %v735, %v734
    %v737 = vmul.f32 0.5, %v736
    %v738 = vsub.f32 1.5, %v737
    %v739 = vmul.f32 %v734, %v738
    %vm740 = vweird.f32 %v583
    %vm741 = vweird.f32 %v734
    %vm742 = vmor %vm740, %vm741
    %v743 = vsel %vm742, %v734, %v739
    %v744 = vmul.f32 %v456, %v593
    %v745 = vmul.f32 %v457, %v603
    %v746 = vmul.f32 %v458, %v613
    %v747 = vmul.f32 %v459, %v623
    %v748 = vmul.f32 %v460, %v633
    %v749 = vmul.f32 %v461, %v643
    %v750 = vmul.f32 %v462, %v653
    %v751 = vmul.f32 %v463, %v663
    %v752 = vmul.f32 %v464, %v673
    %v753 = vmul.f32 %v465, %v683
    %v754 = vmul.f32 %v466, %v693
    %v755 = vmul.f32 %v467, %v703
    %v756 = vmul.f32 %v468, %v713
    %v757 = vmul.f32 %v469, %v723
    %v758 = vmul.f32 %v470, %v733
    %v759 = vmul.f32 %v471, %v743
    %776 = vrot.lane.b32.xlu0 %v593, 4
    %v777 = vpop.permute.xlu0 %776
    %778 = vrot.lane.b32.xlu0 %v603, 4
    %v779 = vpop.permute.xlu0 %778
    %780 = vrot.lane.b32.xlu0 %v613, 4
    %v781 = vpop.permute.xlu0 %780
    %782 = vrot.lane.b32.xlu0 %v623, 4
    %v783 = vpop.permute.xlu0 %782
    %784 = vrot.lane.b32.xlu0 %v633, 4
    %v785 = vpop.permute.xlu0 %784
    %786 = vrot.lane.b32.xlu0 %v643, 4
    %v787 = vpop.permute.xlu0 %786
    %788 = vrot.lane.b32.xlu0 %v653, 4
    %v789 = vpop.permute.xlu0 %788
    %790 = vrot.lane.b32.xlu0 %v663, 4
    %v791 = vpop.permute.xlu0 %790
    %792 = vrot.lane.b32.xlu0 %v673, 4
    %v793 = vpop.permute.xlu0 %792
    %794 = vrot.lane.b32.xlu0 %v683, 4
    %v795 = vpop.permute.xlu0 %794
    %796 = vrot.lane.b32.xlu0 %v693, 4
    %v797 = vpop.permute.xlu0 %796
    %798 = vrot.lane.b32.xlu0 %v703, 4
    %v799 = vpop.permute.xlu0 %798
    %800 = vrot.lane.b32.xlu0 %v713, 4
    %v801 = vpop.permute.xlu0 %800
    %802 = vrot.lane.b32.xlu0 %v723, 4
    %v803 = vpop.permute.xlu0 %802
    %804 = vrot.lane.b32.xlu0 %v733, 4
    %v805 = vpop.permute.xlu0 %804
    %806 = vrot.lane.b32.xlu0 %v743, 4
    %v807 = vpop.permute.xlu0 %806
    %v824 = vmul.f32 %v456, %v777
    %v825 = vmul.f32 %v457, %v779
    %v826 = vmul.f32 %v458, %v781
    %v827 = vmul.f32 %v459, %v783
    %v828 = vmul.f32 %v460, %v785
    %v829 = vmul.f32 %v461, %v787
    %v830 = vmul.f32 %v462, %v789
    %v831 = vmul.f32 %v463, %v791
    %v832 = vmul.f32 %v464, %v793
    %v833 = vmul.f32 %v465, %v795
    %v834 = vmul.f32 %v466, %v797
    %v835 = vmul.f32 %v467, %v799
    %v836 = vmul.f32 %v468, %v801
    %v837 = vmul.f32 %v469, %v803
    %v838 = vmul.f32 %v470, %v805
    %v839 = vmul.f32 %v471, %v807
    %856 = vrot.lane.b32.xlu0 %v744, 12
    %v857 = vpop.permute.xlu0 %856
    %858 = vrot.lane.b32.xlu0 %v745, 12
    %v859 = vpop.permute.xlu0 %858
    %860 = vrot.lane.b32.xlu0 %v746, 12
    %v861 = vpop.permute.xlu0 %860
    %862 = vrot.lane.b32.xlu0 %v747, 12
    %v863 = vpop.permute.xlu0 %862
    %864 = vrot.lane.b32.xlu0 %v748, 12
    %v865 = vpop.permute.xlu0 %864
    %866 = vrot.lane.b32.xlu0 %v749, 12
    %v867 = vpop.permute.xlu0 %866
    %868 = vrot.lane.b32.xlu0 %v750, 12
    %v869 = vpop.permute.xlu0 %868
    %870 = vrot.lane.b32.xlu0 %v751, 12
    %v871 = vpop.permute.xlu0 %870
    %872 = vrot.lane.b32.xlu0 %v752, 12
    %v873 = vpop.permute.xlu0 %872
    %874 = vrot.lane.b32.xlu0 %v753, 12
    %v875 = vpop.permute.xlu0 %874
    %876 = vrot.lane.b32.xlu0 %v754, 12
    %v877 = vpop.permute.xlu0 %876
    %878 = vrot.lane.b32.xlu0 %v755, 12
    %v879 = vpop.permute.xlu0 %878
    %880 = vrot.lane.b32.xlu0 %v756, 12
    %v881 = vpop.permute.xlu0 %880
    %882 = vrot.lane.b32.xlu0 %v757, 12
    %v883 = vpop.permute.xlu0 %882
    %884 = vrot.lane.b32.xlu0 %v758, 12
    %v885 = vpop.permute.xlu0 %884
    %886 = vrot.lane.b32.xlu0 %v759, 12
    %v887 = vpop.permute.xlu0 %886
    %v904 = vmul.f32 %v408, %v857
    %v905 = vmul.f32 %v409, %v859
    %v906 = vmul.f32 %v410, %v861
    %v907 = vmul.f32 %v411, %v863
    %v908 = vmul.f32 %v412, %v865
    %v909 = vmul.f32 %v413, %v867
    %v910 = vmul.f32 %v414, %v869
    %v911 = vmul.f32 %v415, %v871
    %v912 = vmul.f32 %v416, %v873
    %v913 = vmul.f32 %v417, %v875
    %v914 = vmul.f32 %v418, %v877
    %v915 = vmul.f32 %v419, %v879
    %v916 = vmul.f32 %v420, %v881
    %v917 = vmul.f32 %v421, %v883
    %v918 = vmul.f32 %v422, %v885
    %v919 = vmul.f32 %v423, %v887
    %936 = vrot.lane.b32.xlu0 %v824, 8
    %v937 = vpop.permute.xlu0 %936
    %938 = vrot.lane.b32.xlu0 %v825, 8
    %v939 = vpop.permute.xlu0 %938
    %940 = vrot.lane.b32.xlu0 %v826, 8
    %v941 = vpop.permute.xlu0 %940
    %942 = vrot.lane.b32.xlu0 %v827, 8
    %v943 = vpop.permute.xlu0 %942
    %944 = vrot.lane.b32.xlu0 %v828, 8
    %v945 = vpop.permute.xlu0 %944
    %946 = vrot.lane.b32.xlu0 %v829, 8
    %v947 = vpop.permute.xlu0 %946
    %948 = vrot.lane.b32.xlu0 %v830, 8
    %v949 = vpop.permute.xlu0 %948
    %950 = vrot.lane.b32.xlu0 %v831, 8
    %v951 = vpop.permute.xlu0 %950
    %952 = vrot.lane.b32.xlu0 %v832, 8
    %v953 = vpop.permute.xlu0 %952
    %954 = vrot.lane.b32.xlu0 %v833, 8
    %v955 = vpop.permute.xlu0 %954
    %956 = vrot.lane.b32.xlu0 %v834, 8
    %v957 = vpop.permute.xlu0 %956
    %958 = vrot.lane.b32.xlu0 %v835, 8
    %v959 = vpop.permute.xlu0 %958
    %960 = vrot.lane.b32.xlu0 %v836, 8
    %v961 = vpop.permute.xlu0 %960
    %962 = vrot.lane.b32.xlu0 %v837, 8
    %v963 = vpop.permute.xlu0 %962
    %964 = vrot.lane.b32.xlu0 %v838, 8
    %v965 = vpop.permute.xlu0 %964
    %966 = vrot.lane.b32.xlu0 %v839, 8
    %v967 = vpop.permute.xlu0 %966
    %v984 = vmul.f32 %v408, %v937
    %v985 = vmul.f32 %v409, %v939
    %v986 = vmul.f32 %v410, %v941
    %v987 = vmul.f32 %v411, %v943
    %v988 = vmul.f32 %v412, %v945
    %v989 = vmul.f32 %v413, %v947
    %v990 = vmul.f32 %v414, %v949
    %v991 = vmul.f32 %v415, %v951
    %v992 = vmul.f32 %v416, %v953
    %v993 = vmul.f32 %v417, %v955
    %v994 = vmul.f32 %v418, %v957
    %v995 = vmul.f32 %v419, %v959
    %v996 = vmul.f32 %v420, %v961
    %v997 = vmul.f32 %v421, %v963
    %v998 = vmul.f32 %v422, %v965
    %v999 = vmul.f32 %v423, %v967
    %1016 = vrot.lane.b32.xlu0 %v184, 108
    %v1017 = vpop.permute.xlu0 %1016
    %1018 = vrot.lane.b32.xlu0 %v185, 108
    %v1019 = vpop.permute.xlu0 %1018
    %1020 = vrot.lane.b32.xlu0 %v186, 108
    %v1021 = vpop.permute.xlu0 %1020
    %1022 = vrot.lane.b32.xlu0 %v187, 108
    %v1023 = vpop.permute.xlu0 %1022
    %1024 = vrot.lane.b32.xlu0 %v188, 108
    %v1025 = vpop.permute.xlu0 %1024
    %1026 = vrot.lane.b32.xlu0 %v189, 108
    %v1027 = vpop.permute.xlu0 %1026
    %1028 = vrot.lane.b32.xlu0 %v190, 108
    %v1029 = vpop.permute.xlu0 %1028
    %1030 = vrot.lane.b32.xlu0 %v191, 108
    %v1031 = vpop.permute.xlu0 %1030
    %1032 = vrot.lane.b32.xlu0 %v192, 108
    %v1033 = vpop.permute.xlu0 %1032
    %1034 = vrot.lane.b32.xlu0 %v193, 108
    %v1035 = vpop.permute.xlu0 %1034
    %1036 = vrot.lane.b32.xlu0 %v194, 108
    %v1037 = vpop.permute.xlu0 %1036
    %1038 = vrot.lane.b32.xlu0 %v195, 108
    %v1039 = vpop.permute.xlu0 %1038
    %1040 = vrot.lane.b32.xlu0 %v196, 108
    %v1041 = vpop.permute.xlu0 %1040
    %1042 = vrot.lane.b32.xlu0 %v197, 108
    %v1043 = vpop.permute.xlu0 %1042
    %1044 = vrot.lane.b32.xlu0 %v198, 108
    %v1045 = vpop.permute.xlu0 %1044
    %1046 = vrot.lane.b32.xlu0 %v199, 108
    %v1047 = vpop.permute.xlu0 %1046
    %1080 = vrot.lane.b32.xlu0 %v904, 114
    %v1081 = vpop.permute.xlu0 %1080
    %1082 = vrot.lane.b32.xlu0 %v905, 114
    %v1083 = vpop.permute.xlu0 %1082
    %1084 = vrot.lane.b32.xlu0 %v906, 114
    %v1085 = vpop.permute.xlu0 %1084
    %1086 = vrot.lane.b32.xlu0 %v907, 114
    %v1087 = vpop.permute.xlu0 %1086
    %1088 = vrot.lane.b32.xlu0 %v908, 114
    %v1089 = vpop.permute.xlu0 %1088
    %1090 = vrot.lane.b32.xlu0 %v909, 114
    %v1091 = vpop.permute.xlu0 %1090
    %1092 = vrot.lane.b32.xlu0 %v910, 114
    %v1093 = vpop.permute.xlu0 %1092
    %1094 = vrot.lane.b32.xlu0 %v911, 114
    %v1095 = vpop.permute.xlu0 %1094
    %1096 = vrot.lane.b32.xlu0 %v912, 114
    %v1097 = vpop.permute.xlu0 %1096
    %1098 = vrot.lane.b32.xlu0 %v913, 114
    %v1099 = vpop.permute.xlu0 %1098
    %1100 = vrot.lane.b32.xlu0 %v914, 114
    %v1101 = vpop.permute.xlu0 %1100
    %1102 = vrot.lane.b32.xlu0 %v915, 114
    %v1103 = vpop.permute.xlu0 %1102
    %1104 = vrot.lane.b32.xlu0 %v916, 114
    %v1105 = vpop.permute.xlu0 %1104
    %1106 = vrot.lane.b32.xlu0 %v917, 114
    %v1107 = vpop.permute.xlu0 %1106
    %1108 = vrot.lane.b32.xlu0 %v918, 114
    %v1109 = vpop.permute.xlu0 %1108
    %1110 = vrot.lane.b32.xlu0 %v919, 114
    %v1111 = vpop.permute.xlu0 %1110
    %1144 = vrot.lane.b32.xlu0 %v984, 118
    %v1145 = vpop.permute.xlu0 %1144
    %1146 = vrot.lane.b32.xlu0 %v985, 118
    %v1147 = vpop.permute.xlu0 %1146
    %1148 = vrot.lane.b32.xlu0 %v986, 118
    %v1149 = vpop.permute.xlu0 %1148
    %1150 = vrot.lane.b32.xlu0 %v987, 118
    %v1151 = vpop.permute.xlu0 %1150
    %1152 = vrot.lane.b32.xlu0 %v988, 118
    %v1153 = vpop.permute.xlu0 %1152
    %1154 = vrot.lane.b32.xlu0 %v989, 118
    %v1155 = vpop.permute.xlu0 %1154
    %1156 = vrot.lane.b32.xlu0 %v990, 118
    %v1157 = vpop.permute.xlu0 %1156
    %1158 = vrot.lane.b32.xlu0 %v991, 118
    %v1159 = vpop.permute.xlu0 %1158
    %1160 = vrot.lane.b32.xlu0 %v992, 118
    %v1161 = vpop.permute.xlu0 %1160
    %1162 = vrot.lane.b32.xlu0 %v993, 118
    %v1163 = vpop.permute.xlu0 %1162
    %1164 = vrot.lane.b32.xlu0 %v994, 118
    %v1165 = vpop.permute.xlu0 %1164
    %1166 = vrot.lane.b32.xlu0 %v995, 118
    %v1167 = vpop.permute.xlu0 %1166
    %1168 = vrot.lane.b32.xlu0 %v996, 118
    %v1169 = vpop.permute.xlu0 %1168
    %1170 = vrot.lane.b32.xlu0 %v997, 118
    %v1171 = vpop.permute.xlu0 %1170
    %1172 = vrot.lane.b32.xlu0 %v998, 118
    %v1173 = vpop.permute.xlu0 %1172
    %1174 = vrot.lane.b32.xlu0 %v999, 118
    %v1175 = vpop.permute.xlu0 %1174
    %vm1192 = vcmask 15360
    %v1193 = vsel %vm1192, %v1017, %v1081
    %v1194 = vsel %vm1192, %v1019, %v1083
    %v1195 = vsel %vm1192, %v1021, %v1085
    %v1196 = vsel %vm1192, %v1023, %v1087
    %v1197 = vsel %vm1192, %v1025, %v1089
    %v1198 = vsel %vm1192, %v1027, %v1091
    %v1199 = vsel %vm1192, %v1029, %v1093
    %v1200 = vsel %vm1192, %v1031, %v1095
    %v1201 = vsel %vm1192, %v1033, %v1097
    %v1202 = vsel %vm1192, %v1035, %v1099
    %v1203 = vsel %vm1192, %v1037, %v1101
    %v1204 = vsel %vm1192, %v1039, %v1103
    %v1205 = vsel %vm1192, %v1041, %v1105
    %v1206 = vsel %vm1192, %v1043, %v1107
    %v1207 = vsel %vm1192, %v1045, %v1109
    %v1208 = vsel %vm1192, %v1047, %v1111
    %vm1209 = vcmask 48128
    %v1210 = vsel %vm1209, %v1193, %v1145
    %v1211 = vsel %vm1209, %v1194, %v1147
    %v1212 = vsel %vm1209, %v1195, %v1149
    %v1213 = vsel %vm1209, %v1196, %v1151
    %v1214 = vsel %vm1209, %v1197, %v1153
    %v1215 = vsel %vm1209, %v1198, %v1155
    %v1216 = vsel %vm1209, %v1199, %v1157
    %v1217 = vsel %vm1209, %v1200, %v1159
    %v1218 = vsel %vm1209, %v1201, %v1161
    %v1219 = vsel %vm1209, %v1202, %v1163
    %v1220 = vsel %vm1209, %v1203, %v1165
    %v1221 = vsel %vm1209, %v1204, %v1167
    %v1222 = vsel %vm1209, %v1205, %v1169
    %v1223 = vsel %vm1209, %v1206, %v1171
    %v1224 = vsel %vm1209, %v1207, %v1173
    %v1225 = vsel %vm1209, %v1208, %v1175
    %vm1226 = vcmask 80896
    %v1227 = vsel %vm1226, %v1210, 0.0
    %v1228 = vsel %vm1226, %v1211, 0.0
    %v1229 = vsel %vm1226, %v1212, 0.0
    %v1230 = vsel %vm1226, %v1213, 0.0
    %v1231 = vsel %vm1226, %v1214, 0.0
    %v1232 = vsel %vm1226, %v1215, 0.0
    %v1233 = vsel %vm1226, %v1216, 0.0
    %v1234 = vsel %vm1226, %v1217, 0.0
    %v1235 = vsel %vm1226, %v1218, 0.0
    %v1236 = vsel %vm1226, %v1219, 0.0
    %v1237 = vsel %vm1226, %v1220, 0.0
    %v1238 = vsel %vm1226, %v1221, 0.0
    %v1239 = vsel %vm1226, %v1222, 0.0
    %v1240 = vsel %vm1226, %v1223, 0.0
    %v1241 = vsel %vm1226, %v1224, 0.0
    %v1242 = vsel %vm1226, %v1225, 0.0
    %vm1243 = vcmask 130048
    %1244 = vst.msk [vmem:[%s3] sm:$0xff] %vm1243, %v1227
    %1245 = vst.msk [vmem:[%s3 + $0x8] sm:$0xff] %vm1243, %v1228
    %1246 = vst.msk [vmem:[%s3 + $0x10] sm:$0xff] %vm1243, %v1229
    %1247 = vst.msk [vmem:[%s3 + $0x18] sm:$0xff] %vm1243, %v1230
    %1248 = vst.msk [vmem:[%s3 + $0x20] sm:$0xff] %vm1243, %v1231
    %1249 = vst.msk [vmem:[%s3 + $0x28] sm:$0xff] %vm1243, %v1232
    %1250 = vst.msk [vmem:[%s3 + $0x30] sm:$0xff] %vm1243, %v1233
    %1251 = vst.msk [vmem:[%s3 + $0x38] sm:$0xff] %vm1243, %v1234
    %1252 = vst.msk [vmem:[%s3 + $0x40] sm:$0xff] %vm1243, %v1235
    %1253 = vst.msk [vmem:[%s3 + $0x48] sm:$0xff] %vm1243, %v1236
    %1254 = vst.msk [vmem:[%s3 + $0x50] sm:$0xff] %vm1243, %v1237
    %1255 = vst.msk [vmem:[%s3 + $0x58] sm:$0xff] %vm1243, %v1238
    %1256 = vst.msk [vmem:[%s3 + $0x60] sm:$0xff] %vm1243, %v1239
    %1257 = vst.msk [vmem:[%s3 + $0x68] sm:$0xff] %vm1243, %v1240
    %1258 = vst.msk [vmem:[%s3 + $0x70] sm:$0xff] %vm1243, %v1241
    %1259 = vst.msk [vmem:[%s3 + $0x78] sm:$0xff] %vm1243, %v1242
  $region21: #{emd_insar_forward.2} parent=0 // pred_fallthru
    _
  // Predicated region
  $region22: #{emd_insar_forward.2} parent=0 // pred_check
    _
  $region23: #{emd_insar_forward.2} parent=0 // pred_check_branch
    %1261 = sbr.rel (0) target = $region25
  $region24: #{emd_insar_forward.2} parent=0 // pred_region
    _
  $region25: #{emd_insar_forward.2} parent=0 // pred_fallthru
    _
  // Predicated region
  $region26: #{emd_insar_forward.2} parent=0 // pred_check
    _
  $region27: #{emd_insar_forward.2} parent=0 // pred_check_branch
    %1263 = sbr.rel (0) target = $region29
  $region28: #{emd_insar_forward.2} parent=0 // pred_region
    _
  $region29: #{emd_insar_forward.2} parent=0 // pred_fallthru
    _

</llo_original>
